<compile_context>
chip_gen: v5e
topology: v5e:2x2
jax: 0.10.0
libtpu: 0.0.40
codegen_flags: <defaults>
</compile_context>

<pallas_src>
import functools

import jax
import jax.numpy as jnp
from jax.experimental import pallas as pl
from jax.experimental.pallas import tpu as pltpu

EPS = 1e-5


def conv_bn_kernel(x_ref, w_ref, g_ref, b_ref, o_ref, *, inv_m):
    # x_ref: (Cin, M)   w_ref: (Cout, Cin)   g_ref/b_ref: (Cout, 1)   o_ref: (Cout, M)
    x = x_ref[...]
    w = w_ref[...]

    # 1x1 conv == one MXU matmul producing the channel-major activation layout.
    y = jnp.dot(w, x, preferred_element_type=jnp.float32)        # (Cout, M)

    # Training-mode batch stats via raw moments (single pass over y, no centered
    # intermediate).  Reductions run on the XLU; the MXU/VPU are idle by then.
    sum_y = jnp.sum(y, axis=1, keepdims=True)                    # (Cout, 1)
    sum_y2 = jnp.sum(y * y, axis=1, keepdims=True)               # (Cout, 1)
    mean = sum_y * inv_m
    var = sum_y2 * inv_m - mean * mean                           # biased variance

    # Fold BN affine into one per-channel scale/shift -> single FMA tail.
    scale = g_ref[...] * jax.lax.rsqrt(var + EPS)                # (Cout, 1)
    shift = b_ref[...] - mean * scale                            # (Cout, 1)
    o_ref[...] = y * scale + shift


def conv2d_bn_forward(x_nchw, w_oihw, gamma, beta):
    """x_nchw: (N, Cin, H, W); w_oihw: (Cout, Cin, 1, 1)."""
    n, cin, h, wd = x_nchw.shape
    cout = w_oihw.shape[0]
    m = n * h * wd

    # Input side: for N == 1 this is a free (metadata-only) reshape, no transpose.
    if n == 1:
        x2d = x_nchw.reshape(cin, m).astype(jnp.float32)
    else:
        x2d = jnp.transpose(x_nchw, (1, 0, 2, 3)).reshape(cin, m).astype(jnp.float32)

    # (Cout, Cin, 1, 1) -> (Cout, Cin): free reshape.
    w2d = w_oihw.reshape(cout, cin).astype(jnp.float32)
    g2d = gamma.reshape(cout, 1).astype(jnp.float32)
    b2d = beta.reshape(cout, 1).astype(jnp.float32)

    kernel = functools.partial(conv_bn_kernel, inv_m=1.0 / float(m))

    # Everything is a single VMEM-resident block (x ~50KB, W ~96KB, y ~300KB),
    # so keep grid=(1,): no pipelining, one kernel invocation.
    y_t = pl.pallas_call(
        kernel,
        out_shape=jax.ShapeDtypeStruct((cout, m), jnp.float32),
        grid=(1,),
        in_specs=[
            pl.BlockSpec((cin, m), lambda i: (0, 0)),
            pl.BlockSpec((cout, cin), lambda i: (0, 0)),
            pl.BlockSpec((cout, 1), lambda i: (0, 0)),
            pl.BlockSpec((cout, 1), lambda i: (0, 0)),
        ],
        out_specs=pl.BlockSpec((cout, m), lambda i: (0, 0)),
        compiler_params=pltpu.CompilerParams(
            dimension_semantics=("arbitrary",)
        ),
    )(x2d, w2d, g2d, b2d)

    # Output side: for N == 1 the reshape back to NCHW is metadata-only.
    out = y_t.reshape(cout, n, h, wd)
    if n == 1:
        return out.reshape(n, cout, h, wd)
    return jnp.transpose(out, (1, 0, 2, 3))

    # TODO(synk): BatchNorm2d running_mean/running_var buffer updates
    # (track_running_stats side effect in .train()) are not emitted; only the
    # forward output (batch-stat normalization) is produced.


def reference_forward(x_nchw, w_oihw, gamma, beta):
    """Pure-JAX reference for sanity check."""
    n, cin, h, wd = x_nchw.shape
    cout = w_oihw.shape[0]
    x2d = jnp.transpose(x_nchw, (0, 2, 3, 1)).reshape(-1, cin)
    y = x2d @ jnp.transpose(w_oihw.reshape(cout, cin), (1, 0))
    mean = jnp.mean(y, axis=0, keepdims=True)
    var = jnp.mean((y - mean) ** 2, axis=0, keepdims=True)
    y = (y - mean) / jnp.sqrt(var + EPS) * gamma.reshape(1, -1) + beta.reshape(1, -1)
    return jnp.transpose(y.reshape(n, h, wd, cout), (0, 3, 1, 2))


if __name__ == "__main__":
    key = jax.random.PRNGKey(0)
    k_x, k_w, k_g, k_b = jax.random.split(key, 4)

    N, CIN, H, W = 1, 64, 14, 14
    COUT = 384

    x = jax.random.normal(k_x, (N, CIN, H, W), dtype=jnp.float32)
    # Conv2d(64, 384, kernel_size=1, bias=False) weight: (384, 64, 1, 1)
    w = jax.random.normal(k_w, (COUT, CIN, 1, 1), dtype=jnp.float32) * 0.1
    # BatchNorm2d(384) affine params (deterministic, non-trivial)
    gamma = 1.0 + 0.1 * jax.random.normal(k_g, (COUT,), dtype=jnp.float32)
    beta = 0.1 * jax.random.normal(k_b, (COUT,), dtype=jnp.float32)

    out = jax.block_until_ready(conv2d_bn_forward(x, w, gamma, beta))
    ref = jax.block_until_ready(reference_forward(x, w, gamma, beta))

    assert out.shape == (N, COUT, H, W), out.shape
    max_err = float(jnp.max(jnp.abs(out - ref)))
    assert jnp.allclose(out, ref, atol=1e-4, rtol=1e-4), max_err

    print("KERNEL_OK")
</pallas_src>

<mosaic_0001>
module attributes {stable_mosaic.version = 11 : i64} {
  func.func @conv_bn_kernel(%arg0: i32, %arg1: memref<64x196xf32, #tpu.memory_space<vmem>>, %arg2: memref<384x64xf32, #tpu.memory_space<vmem>>, %arg3: memref<384x1xf32, #tpu.memory_space<vmem>>, %arg4: memref<384x1xf32, #tpu.memory_space<vmem>>, %arg5: memref<384x196xf32, #tpu.memory_space<vmem>>) attributes {dimension_semantics = [#tpu.dimension_semantics<arbitrary>], iteration_bounds = array<i64: 1>, scalar_prefetch = 0 : i64, scratch_operands = 0 : i64, tpu.core_type = #tpu.core_type<tc>, window_params = [{pipeline_mode = #tpu.pipeline_mode<synchronous>, transform_indices = @transform_0, window_bounds = array<i64: 64, 196>}, {pipeline_mode = #tpu.pipeline_mode<synchronous>, transform_indices = @transform_1, window_bounds = array<i64: 384, 64>}, {pipeline_mode = #tpu.pipeline_mode<synchronous>, transform_indices = @transform_2, window_bounds = array<i64: 384, 1>}, {pipeline_mode = #tpu.pipeline_mode<synchronous>, transform_indices = @transform_3, window_bounds = array<i64: 384, 1>}, {pipeline_mode = #tpu.pipeline_mode<synchronous>, transform_indices = @transform_4, window_bounds = array<i64: 384, 196>}]} {
    %c0 = arith.constant 0 : index
    %c0_0 = arith.constant 0 : index
    %0 = vector.load %arg1[%c0, %c0_0] : memref<64x196xf32, #tpu.memory_space<vmem>>, vector<64x196xf32>
    %c0_1 = arith.constant 0 : index
    %c0_2 = arith.constant 0 : index
    %1 = vector.load %arg2[%c0_1, %c0_2] : memref<384x64xf32, #tpu.memory_space<vmem>>, vector<384x64xf32>
    %cst = arith.constant dense<0.000000e+00> : vector<384x196xf32>
    %2 = tpu.matmul %1, %0, %cst {dimension_numbers = #tpu.dot_dimension_numbers<[1], [0], [0], [1], [0, 0, 1, 1], [], []>} : vector<384x64xf32>, vector<64x196xf32>, vector<384x196xf32> -> vector<384x196xf32>
    %cst_3 = arith.constant dense<0.000000e+00> : vector<384xf32>
    %3 = vector.multi_reduction <add>, %2, %cst_3 [1] : vector<384x196xf32> to vector<384xf32>
    %4 = vector.shape_cast %3 : vector<384xf32> to vector<384x1xf32>
    %5 = arith.mulf %2, %2 : vector<384x196xf32>
    %cst_4 = arith.constant dense<0.000000e+00> : vector<384xf32>
    %6 = vector.multi_reduction <add>, %5, %cst_4 [1] : vector<384x196xf32> to vector<384xf32>
    %7 = vector.shape_cast %6 : vector<384xf32> to vector<384x1xf32>
    %cst_5 = arith.constant 0.00510204071 : f32
    %8 = vector.broadcast %cst_5 : f32 to vector<384x1xf32>
    %9 = arith.mulf %4, %8 : vector<384x1xf32>
    %cst_6 = arith.constant 0.00510204071 : f32
    %10 = vector.broadcast %cst_6 : f32 to vector<384x1xf32>
    %11 = arith.mulf %7, %10 : vector<384x1xf32>
    %12 = arith.mulf %9, %9 : vector<384x1xf32>
    %13 = arith.subf %11, %12 : vector<384x1xf32>
    %c0_7 = arith.constant 0 : index
    %c0_8 = arith.constant 0 : index
    %14 = vector.load %arg3[%c0_7, %c0_8] : memref<384x1xf32, #tpu.memory_space<vmem>>, vector<384x1xf32>
    %cst_9 = arith.constant 9.99999974E-6 : f32
    %15 = vector.broadcast %cst_9 : f32 to vector<384x1xf32>
    %16 = arith.addf %13, %15 : vector<384x1xf32>
    %17 = math.rsqrt %16 : vector<384x1xf32>
    %18 = arith.mulf %14, %17 : vector<384x1xf32>
    %c0_10 = arith.constant 0 : index
    %c0_11 = arith.constant 0 : index
    %19 = vector.load %arg4[%c0_10, %c0_11] : memref<384x1xf32, #tpu.memory_space<vmem>>, vector<384x1xf32>
    %20 = arith.mulf %9, %18 : vector<384x1xf32>
    %21 = arith.subf %19, %20 : vector<384x1xf32>
    %22 = vector.broadcast %18 : vector<384x1xf32> to vector<384x196xf32>
    %23 = arith.mulf %2, %22 : vector<384x196xf32>
    %24 = vector.broadcast %21 : vector<384x1xf32> to vector<384x196xf32>
    %25 = arith.addf %23, %24 : vector<384x196xf32>
    %c0_12 = arith.constant 0 : index
    %c0_13 = arith.constant 0 : index
    %26 = vector.load %arg5[%c0_12, %c0_13] : memref<384x196xf32, #tpu.memory_space<vmem>>, vector<384x196xf32>
    tpu.vector_store %arg5[%c0_12, %c0_13], %25 {strides = array<i32>} : memref<384x196xf32, #tpu.memory_space<vmem>>, vector<384x196xf32>,
    return
  }
  func.func @transform_0(%arg0: i32) -> (i32, i32) {
    %c0_i32 = arith.constant 0 : i32
    %c0_i32_0 = arith.constant 0 : i32
    %c0_i32_1 = arith.constant 0 : i32
    return %c0_i32, %c0_i32_0 : i32, i32
  }
  func.func @transform_1(%arg0: i32) -> (i32, i32) {
    %c0_i32 = arith.constant 0 : i32
    %c0_i32_0 = arith.constant 0 : i32
    %c0_i32_1 = arith.constant 0 : i32
    return %c0_i32, %c0_i32_0 : i32, i32
  }
  func.func @transform_2(%arg0: i32) -> (i32, i32) {
    %c0_i32 = arith.constant 0 : i32
    %c0_i32_0 = arith.constant 0 : i32
    %c0_i32_1 = arith.constant 0 : i32
    return %c0_i32, %c0_i32_0 : i32, i32
  }
  func.func @transform_3(%arg0: i32) -> (i32, i32) {
    %c0_i32 = arith.constant 0 : i32
    %c0_i32_0 = arith.constant 0 : i32
    %c0_i32_1 = arith.constant 0 : i32
    return %c0_i32, %c0_i32_0 : i32, i32
  }
  func.func @transform_4(%arg0: i32) -> (i32, i32) {
    %c0_i32 = arith.constant 0 : i32
    %c0_i32_0 = arith.constant 0 : i32
    %c0_i32_1 = arith.constant 0 : i32
    return %c0_i32, %c0_i32_0 : i32, i32
  }
}

</mosaic_0001>

<llo_original>
// kernel: tpu_custom_call.1
$region0: #{tpu_custom_call.1}
  #allocation0 [shape = 'u32[]', space=smem, size = 0x4, offset = 0x4, fixed_abs, tag = 'smem constant byte address 0x4 - core index']
  #allocation1 [shape = 'u32[72,128]{1,0:T(1,128)}', space=vmem, size = 0x9000, scoped, tag = 'internal scratch']
  %s0 = inlined_call_operand.vmem [shape: f32[64,196], index: 0, kind: input, shape index: {}]
  %s1 = inlined_call_operand.vmem [shape: f32[384,64], index: 1, kind: input, shape index: {}]
  %s2 = inlined_call_operand.vmem [shape: f32[384,1], index: 2, kind: input, shape index: {}]
  %s3 = inlined_call_operand.vmem [shape: f32[384,1], index: 3, kind: input, shape index: {}]
  %s4 = inlined_call_operand.vmem [shape: f32[384,196], index: 4, kind: output, shape index: {}]
  %s5 = sld [smem:[#allocation0]]
  $region26: #{tpu_custom_call.1} parent=0
    _
  %s7 = ssub.s32 1, %s5
  %s8 = scalar_select 0, %s7, %s5
  // Predicated region
  $region2: #{tpu_custom_call.1} parent=0 // pred_check
    _
  $region3: #{tpu_custom_call.1} parent=0 // pred_check_branch
    %10 = sbr.rel (0) target = $region5
  $region4: #{tpu_custom_call.1} parent=0 // pred_region
    _
  $region5: #{tpu_custom_call.1} parent=0 // pred_fallthru
    _
  // Predicated region
  $region6: #{tpu_custom_call.1} parent=0 // pred_check
    _
  $region7: #{tpu_custom_call.1} parent=0 // pred_check_branch
    %12 = sbr.rel (0) target = $region9
  $region8: #{tpu_custom_call.1} parent=0 // pred_region
    _
  $region9: #{tpu_custom_call.1} parent=0 // pred_fallthru
    _
  // Predicated region
  $region10: #{tpu_custom_call.1} parent=0 // pred_check
    _
  $region11: #{tpu_custom_call.1} parent=0 // pred_check_branch
    %14 = sbr.rel (0) target = $region13
  $region12: #{tpu_custom_call.1} parent=0 // pred_region
    _
  $region13: #{tpu_custom_call.1} parent=0 // pred_fallthru
    _
  // Predicated region
  $region14: #{tpu_custom_call.1} parent=0 // pred_check
    _
  $region15: #{tpu_custom_call.1} parent=0 // pred_check_branch
    %16 = sbr.rel (0) target = $region17
  $region16: #{tpu_custom_call.1} parent=0 // pred_region
    _
  $region17: #{tpu_custom_call.1} parent=0 // pred_fallthru
    _
  %v17 = vld [vmem:[%s0] sm:$0xff]
  %v18 = vld [vmem:[%s0 + $0x8] sm:$0xff]
  %v19 = vld [vmem:[%s0 + $0x10] sm:$0xff]
  %v20 = vld [vmem:[%s0 + $0x18] sm:$0xff]
  %v21 = vld [vmem:[%s0 + $0x20] sm:$0xff]
  %v22 = vld [vmem:[%s0 + $0x28] sm:$0xff]
  %v23 = vld [vmem:[%s0 + $0x30] sm:$0xff]
  %v24 = vld [vmem:[%s0 + $0x38] sm:$0xff]
  %v25 = vld [vmem:[%s0 + $0x40] sm:$0xff]
  %v26 = vld [vmem:[%s0 + $0x48] sm:$0xff]
  %v27 = vld [vmem:[%s0 + $0x50] sm:$0xff]
  %v28 = vld [vmem:[%s0 + $0x58] sm:$0xff]
  %v29 = vld [vmem:[%s0 + $0x60] sm:$0xff]
  %v30 = vld [vmem:[%s0 + $0x68] sm:$0xff]
  %v31 = vld [vmem:[%s0 + $0x70] sm:$0xff]
  %v32 = vld [vmem:[%s0 + $0x78] sm:$0xff]
  %v33 = vld [vmem:[%s1] sm:$0xff]
  %v34 = vld [vmem:[%s1 + $0x8] sm:$0xff]
  %v35 = vld [vmem:[%s1 + $0x10] sm:$0xff]
  %v36 = vld [vmem:[%s1 + $0x18] sm:$0xff]
  %v37 = vld [vmem:[%s1 + $0x20] sm:$0xff]
  %v38 = vld [vmem:[%s1 + $0x28] sm:$0xff]
  %v39 = vld [vmem:[%s1 + $0x30] sm:$0xff]
  %v40 = vld [vmem:[%s1 + $0x38] sm:$0xff]
  %v41 = vld [vmem:[%s1 + $0x40] sm:$0xff]
  %v42 = vld [vmem:[%s1 + $0x48] sm:$0xff]
  %v43 = vld [vmem:[%s1 + $0x50] sm:$0xff]
  %v44 = vld [vmem:[%s1 + $0x58] sm:$0xff]
  %v45 = vld [vmem:[%s1 + $0x60] sm:$0xff]
  %v46 = vld [vmem:[%s1 + $0x68] sm:$0xff]
  %v47 = vld [vmem:[%s1 + $0x70] sm:$0xff]
  %v48 = vld [vmem:[%s1 + $0x78] sm:$0xff]
  %v49 = vld [vmem:[%s1 + $0x80] sm:$0xff]
  %v50 = vld [vmem:[%s1 + $0x88] sm:$0xff]
  %v51 = vld [vmem:[%s1 + $0x90] sm:$0xff]
  %v52 = vld [vmem:[%s1 + $0x98] sm:$0xff]
  %v53 = vld [vmem:[%s1 + $0xa0] sm:$0xff]
  %v54 = vld [vmem:[%s1 + $0xa8] sm:$0xff]
  %v55 = vld [vmem:[%s1 + $0xb0] sm:$0xff]
  %v56 = vld [vmem:[%s1 + $0xb8] sm:$0xff]
  %v57 = vld [vmem:[%s1 + $0xc0] sm:$0xff]
  %v58 = vld [vmem:[%s1 + $0xc8] sm:$0xff]
  %v59 = vld [vmem:[%s1 + $0xd0] sm:$0xff]
  %v60 = vld [vmem:[%s1 + $0xd8] sm:$0xff]
  %v61 = vld [vmem:[%s1 + $0xe0] sm:$0xff]
  %v62 = vld [vmem:[%s1 + $0xe8] sm:$0xff]
  %v63 = vld [vmem:[%s1 + $0xf0] sm:$0xff]
  %v64 = vld [vmem:[%s1 + $0xf8] sm:$0xff]
  %v65 = vld [vmem:[%s1 + $0x100] sm:$0xff]
  %v66 = vld [vmem:[%s1 + $0x108] sm:$0xff]
  %v67 = vld [vmem:[%s1 + $0x110] sm:$0xff]
  %v68 = vld [vmem:[%s1 + $0x118] sm:$0xff]
  %v69 = vld [vmem:[%s1 + $0x120] sm:$0xff]
  %v70 = vld [vmem:[%s1 + $0x128] sm:$0xff]
  %v71 = vld [vmem:[%s1 + $0x130] sm:$0xff]
  %v72 = vld [vmem:[%s1 + $0x138] sm:$0xff]
  %v73 = vld [vmem:[%s1 + $0x140] sm:$0xff]
  %v74 = vld [vmem:[%s1 + $0x148] sm:$0xff]
  %v75 = vld [vmem:[%s1 + $0x150] sm:$0xff]
  %v76 = vld [vmem:[%s1 + $0x158] sm:$0xff]
  %v77 = vld [vmem:[%s1 + $0x160] sm:$0xff]
  %v78 = vld [vmem:[%s1 + $0x168] sm:$0xff]
  %v79 = vld [vmem:[%s1 + $0x170] sm:$0xff]
  %v80 = vld [vmem:[%s1 + $0x178] sm:$0xff]
  %vm81 = vcmask 523264
  %v83 = vsel %vm81, %v33, 0
  %v86 = vsel %vm81, %v34, 0
  %v89 = vsel %vm81, %v35, 0
  %v92 = vsel %vm81, %v36, 0
  %v95 = vsel %vm81, %v37, 0
  %v98 = vsel %vm81, %v38, 0
  %v101 = vsel %vm81, %v39, 0
  %v104 = vsel %vm81, %v40, 0
  %v107 = vsel %vm81, %v41, 0
  %v110 = vsel %vm81, %v42, 0
  %v113 = vsel %vm81, %v43, 0
  %v116 = vsel %vm81, %v44, 0
  %v119 = vsel %vm81, %v45, 0
  %v122 = vsel %vm81, %v46, 0
  %v125 = vsel %vm81, %v47, 0
  %v128 = vsel %vm81, %v48, 0
  %v131 = vsel %vm81, %v49, 0
  %v134 = vsel %vm81, %v50, 0
  %v137 = vsel %vm81, %v51, 0
  %v140 = vsel %vm81, %v52, 0
  %v143 = vsel %vm81, %v53, 0
  %v146 = vsel %vm81, %v54, 0
  %v149 = vsel %vm81, %v55, 0
  %v152 = vsel %vm81, %v56, 0
  %v155 = vsel %vm81, %v57, 0
  %v158 = vsel %vm81, %v58, 0
  %v161 = vsel %vm81, %v59, 0
  %v164 = vsel %vm81, %v60, 0
  %v167 = vsel %vm81, %v61, 0
  %v170 = vsel %vm81, %v62, 0
  %v173 = vsel %vm81, %v63, 0
  %v176 = vsel %vm81, %v64, 0
  %v179 = vsel %vm81, %v65, 0
  %v182 = vsel %vm81, %v66, 0
  %v185 = vsel %vm81, %v67, 0
  %v188 = vsel %vm81, %v68, 0
  %v191 = vsel %vm81, %v69, 0
  %v194 = vsel %vm81, %v70, 0
  %v197 = vsel %vm81, %v71, 0
  %v200 = vsel %vm81, %v72, 0
  %v203 = vsel %vm81, %v73, 0
  %v206 = vsel %vm81, %v74, 0
  %v209 = vsel %vm81, %v75, 0
  %v212 = vsel %vm81, %v76, 0
  %v215 = vsel %vm81, %v77, 0
  %v218 = vsel %vm81, %v78, 0
  %v221 = vsel %vm81, %v79, 0
  %v224 = vsel %vm81, %v80, 0
  %226 = vmatpush.msra.mxu0 0.0
  %227 = vmatpush.msra.mxu0 0.0
  %228 = vmatpush.msra.mxu0 0.0
  %229 = vmatpush.msra.mxu0 0.0
  %230 = vmatpush.msra.mxu0 0.0
  %231 = vmatpush.msra.mxu0 0.0
  %232 = vmatpush.msra.mxu0 0.0
  %233 = vmatpush.msra.mxu0 0.0
  %234 = vmatpush.msra.mxu0 %v31
  %235 = vmatpush.msra.mxu0 %v29
  %236 = vmatpush.msra.mxu0 %v27
  %237 = vmatpush.msra.mxu0 %v25
  %238 = vmatpush.msra.mxu0 %v23
  %239 = vmatpush.msra.mxu0 %v21
  %240 = vmatpush.msra.mxu0 %v19
  %241 = vmatpush.msra.mxu0 %v17
  %242 = vmatmul.f32.gmra.mxu0 %v83
  %v243 = vpop.f32.mrf.mxu0
  %v244 = vadd.f32 0.0, %v243
  %245 = vmatmul.f32.gmra.mxu0 %v86
  %v246 = vpop.f32.mrf.mxu0
  %v247 = vadd.f32 0.0, %v246
  %248 = vmatmul.f32.gmra.mxu0 %v89
  %v249 = vpop.f32.mrf.mxu0
  %v250 = vadd.f32 0.0, %v249
  %251 = vmatmul.f32.gmra.mxu0 %v92
  %v252 = vpop.f32.mrf.mxu0
  %v253 = vadd.f32 0.0, %v252
  %254 = vmatmul.f32.gmra.mxu0 %v95
  %v255 = vpop.f32.mrf.mxu0
  %v256 = vadd.f32 0.0, %v255
  %257 = vmatmul.f32.gmra.mxu0 %v98
  %v258 = vpop.f32.mrf.mxu0
  %v259 = vadd.f32 0.0, %v258
  %260 = vmatmul.f32.gmra.mxu0 %v101
  %v261 = vpop.f32.mrf.mxu0
  %v262 = vadd.f32 0.0, %v261
  %263 = vmatmul.f32.gmra.mxu0 %v104
  %v264 = vpop.f32.mrf.mxu0
  %v265 = vadd.f32 0.0, %v264
  %266 = vmatmul.f32.gmra.mxu0 %v107
  %v267 = vpop.f32.mrf.mxu0
  %v268 = vadd.f32 0.0, %v267
  %269 = vmatmul.f32.gmra.mxu0 %v110
  %v270 = vpop.f32.mrf.mxu0
  %v271 = vadd.f32 0.0, %v270
  %272 = vmatmul.f32.gmra.mxu0 %v113
  %v273 = vpop.f32.mrf.mxu0
  %v274 = vadd.f32 0.0, %v273
  %275 = vmatmul.f32.gmra.mxu0 %v116
  %v276 = vpop.f32.mrf.mxu0
  %v277 = vadd.f32 0.0, %v276
  %278 = vmatmul.f32.gmra.mxu0 %v119
  %v279 = vpop.f32.mrf.mxu0
  %v280 = vadd.f32 0.0, %v279
  %281 = vmatmul.f32.gmra.mxu0 %v122
  %v282 = vpop.f32.mrf.mxu0
  %v283 = vadd.f32 0.0, %v282
  %284 = vmatmul.f32.gmra.mxu0 %v125
  %v285 = vpop.f32.mrf.mxu0
  %v286 = vadd.f32 0.0, %v285
  %287 = vmatmul.f32.gmra.mxu0 %v128
  %v288 = vpop.f32.mrf.mxu0
  %v289 = vadd.f32 0.0, %v288
  %290 = vmatmul.f32.gmra.mxu0 %v131
  %v291 = vpop.f32.mrf.mxu0
  %v292 = vadd.f32 0.0, %v291
  %293 = vmatmul.f32.gmra.mxu0 %v134
  %v294 = vpop.f32.mrf.mxu0
  %v295 = vadd.f32 0.0, %v294
  %296 = vmatmul.f32.gmra.mxu0 %v137
  %v297 = vpop.f32.mrf.mxu0
  %v298 = vadd.f32 0.0, %v297
  %299 = vmatmul.f32.gmra.mxu0 %v140
  %v300 = vpop.f32.mrf.mxu0
  %v301 = vadd.f32 0.0, %v300
  %302 = vmatmul.f32.gmra.mxu0 %v143
  %v303 = vpop.f32.mrf.mxu0
  %v304 = vadd.f32 0.0, %v303
  %305 = vmatmul.f32.gmra.mxu0 %v146
  %v306 = vpop.f32.mrf.mxu0
  %v307 = vadd.f32 0.0, %v306
  %308 = vmatmul.f32.gmra.mxu0 %v149
  %v309 = vpop.f32.mrf.mxu0
  %v310 = vadd.f32 0.0, %v309
  %311 = vmatmul.f32.gmra.mxu0 %v152
  %v312 = vpop.f32.mrf.mxu0
  %v313 = vadd.f32 0.0, %v312
  %314 = vmatmul.f32.gmra.mxu0 %v155
  %v315 = vpop.f32.mrf.mxu0
  %v316 = vadd.f32 0.0, %v315
  %317 = vmatmul.f32.gmra.mxu0 %v158
  %v318 = vpop.f32.mrf.mxu0
  %v319 = vadd.f32 0.0, %v318
  %320 = vmatmul.f32.gmra.mxu0 %v161
  %v321 = vpop.f32.mrf.mxu0
  %v322 = vadd.f32 0.0, %v321
  %323 = vmatmul.f32.gmra.mxu0 %v164
  %v324 = vpop.f32.mrf.mxu0
  %v325 = vadd.f32 0.0, %v324
  %326 = vmatmul.f32.gmra.mxu0 %v167
  %v327 = vpop.f32.mrf.mxu0
  %v328 = vadd.f32 0.0, %v327
  %329 = vmatmul.f32.gmra.mxu0 %v170
  %v330 = vpop.f32.mrf.mxu0
  %v331 = vadd.f32 0.0, %v330
  %332 = vmatmul.f32.gmra.mxu0 %v173
  %v333 = vpop.f32.mrf.mxu0
  %v334 = vadd.f32 0.0, %v333
  %335 = vmatmul.f32.gmra.mxu0 %v176
  %v336 = vpop.f32.mrf.mxu0
  %v337 = vadd.f32 0.0, %v336
  %338 = vmatmul.f32.gmra.mxu0 %v179
  %v339 = vpop.f32.mrf.mxu0
  %v340 = vadd.f32 0.0, %v339
  %341 = vmatmul.f32.gmra.mxu0 %v182
  %v342 = vpop.f32.mrf.mxu0
  %v343 = vadd.f32 0.0, %v342
  %344 = vmatmul.f32.gmra.mxu0 %v185
  %v345 = vpop.f32.mrf.mxu0
  %v346 = vadd.f32 0.0, %v345
  %347 = vmatmul.f32.gmra.mxu0 %v188
  %v348 = vpop.f32.mrf.mxu0
  %v349 = vadd.f32 0.0, %v348
  %350 = vmatmul.f32.gmra.mxu0 %v191
  %v351 = vpop.f32.mrf.mxu0
  %v352 = vadd.f32 0.0, %v351
  %353 = vmatmul.f32.gmra.mxu0 %v194
  %v354 = vpop.f32.mrf.mxu0
  %v355 = vadd.f32 0.0, %v354
  %356 = vmatmul.f32.gmra.mxu0 %v197
  %v357 = vpop.f32.mrf.mxu0
  %v358 = vadd.f32 0.0, %v357
  %359 = vmatmul.f32.gmra.mxu0 %v200
  %v360 = vpop.f32.mrf.mxu0
  %v361 = vadd.f32 0.0, %v360
  %362 = vmatmul.f32.gmra.mxu0 %v203
  %v363 = vpop.f32.mrf.mxu0
  %v364 = vadd.f32 0.0, %v363
  %365 = vmatmul.f32.gmra.mxu0 %v206
  %v366 = vpop.f32.mrf.mxu0
  %v367 = vadd.f32 0.0, %v366
  %368 = vmatmul.f32.gmra.mxu0 %v209
  %v369 = vpop.f32.mrf.mxu0
  %v370 = vadd.f32 0.0, %v369
  %371 = vmatmul.f32.gmra.mxu0 %v212
  %v372 = vpop.f32.mrf.mxu0
  %v373 = vadd.f32 0.0, %v372
  %374 = vmatmul.f32.gmra.mxu0 %v215
  %v375 = vpop.f32.mrf.mxu0
  %v376 = vadd.f32 0.0, %v375
  %377 = vmatmul.f32.gmra.mxu0 %v218
  %v378 = vpop.f32.mrf.mxu0
  %v379 = vadd.f32 0.0, %v378
  %380 = vmatmul.f32.gmra.mxu0 %v221
  %v381 = vpop.f32.mrf.mxu0
  %v382 = vadd.f32 0.0, %v381
  %383 = vmatmul.f32.gmra.mxu0 %v224
  %v384 = vpop.f32.mrf.mxu0
  %v385 = vadd.f32 0.0, %v384
  %386 = vdwg.mxu0
  %387 = vmatpush.msra.mxu0 0.0
  %388 = vmatpush.msra.mxu0 0.0
  %389 = vmatpush.msra.mxu0 0.0
  %390 = vmatpush.msra.mxu0 0.0
  %391 = vmatpush.msra.mxu0 0.0
  %392 = vmatpush.msra.mxu0 0.0
  %393 = vmatpush.msra.mxu0 0.0
  %394 = vmatpush.msra.mxu0 0.0
  %395 = vmatpush.msra.mxu0 %v32
  %396 = vmatpush.msra.mxu0 %v30
  %397 = vmatpush.msra.mxu0 %v28
  %398 = vmatpush.msra.mxu0 %v26
  %399 = vmatpush.msra.mxu0 %v24
  %400 = vmatpush.msra.mxu0 %v22
  %401 = vmatpush.msra.mxu0 %v20
  %402 = vmatpush.msra.mxu0 %v18
  %403 = vmatmul.f32.gmra.mxu0 %v83
  %v404 = vpop.f32.mrf.mxu0
  %v405 = vadd.f32 0.0, %v404
  %406 = vmatmul.f32.gmra.mxu0 %v86
  %v407 = vpop.f32.mrf.mxu0
  %v408 = vadd.f32 0.0, %v407
  %409 = vmatmul.f32.gmra.mxu0 %v89
  %v410 = vpop.f32.mrf.mxu0
  %v411 = vadd.f32 0.0, %v410
  %412 = vmatmul.f32.gmra.mxu0 %v92
  %v413 = vpop.f32.mrf.mxu0
  %v414 = vadd.f32 0.0, %v413
  %415 = vmatmul.f32.gmra.mxu0 %v95
  %v416 = vpop.f32.mrf.mxu0
  %v417 = vadd.f32 0.0, %v416
  %418 = vmatmul.f32.gmra.mxu0 %v98
  %v419 = vpop.f32.mrf.mxu0
  %v420 = vadd.f32 0.0, %v419
  %421 = vmatmul.f32.gmra.mxu0 %v101
  %v422 = vpop.f32.mrf.mxu0
  %v423 = vadd.f32 0.0, %v422
  %424 = vmatmul.f32.gmra.mxu0 %v104
  %v425 = vpop.f32.mrf.mxu0
  %v426 = vadd.f32 0.0, %v425
  %427 = vmatmul.f32.gmra.mxu0 %v107
  %v428 = vpop.f32.mrf.mxu0
  %v429 = vadd.f32 0.0, %v428
  %430 = vmatmul.f32.gmra.mxu0 %v110
  %v431 = vpop.f32.mrf.mxu0
  %v432 = vadd.f32 0.0, %v431
  %433 = vmatmul.f32.gmra.mxu0 %v113
  %v434 = vpop.f32.mrf.mxu0
  %v435 = vadd.f32 0.0, %v434
  %436 = vmatmul.f32.gmra.mxu0 %v116
  %v437 = vpop.f32.mrf.mxu0
  %v438 = vadd.f32 0.0, %v437
  %439 = vmatmul.f32.gmra.mxu0 %v119
  %v440 = vpop.f32.mrf.mxu0
  %v441 = vadd.f32 0.0, %v440
  %442 = vmatmul.f32.gmra.mxu0 %v122
  %v443 = vpop.f32.mrf.mxu0
  %v444 = vadd.f32 0.0, %v443
  %445 = vmatmul.f32.gmra.mxu0 %v125
  %v446 = vpop.f32.mrf.mxu0
  %v447 = vadd.f32 0.0, %v446
  %448 = vmatmul.f32.gmra.mxu0 %v128
  %v449 = vpop.f32.mrf.mxu0
  %v450 = vadd.f32 0.0, %v449
  %451 = vmatmul.f32.gmra.mxu0 %v131
  %v452 = vpop.f32.mrf.mxu0
  %v453 = vadd.f32 0.0, %v452
  %454 = vmatmul.f32.gmra.mxu0 %v134
  %v455 = vpop.f32.mrf.mxu0
  %v456 = vadd.f32 0.0, %v455
  %457 = vmatmul.f32.gmra.mxu0 %v137
  %v458 = vpop.f32.mrf.mxu0
  %v459 = vadd.f32 0.0, %v458
  %460 = vmatmul.f32.gmra.mxu0 %v140
  %v461 = vpop.f32.mrf.mxu0
  %v462 = vadd.f32 0.0, %v461
  %463 = vmatmul.f32.gmra.mxu0 %v143
  %v464 = vpop.f32.mrf.mxu0
  %v465 = vadd.f32 0.0, %v464
  %466 = vmatmul.f32.gmra.mxu0 %v146
  %v467 = vpop.f32.mrf.mxu0
  %v468 = vadd.f32 0.0, %v467
  %469 = vmatmul.f32.gmra.mxu0 %v149
  %v470 = vpop.f32.mrf.mxu0
  %v471 = vadd.f32 0.0, %v470
  %472 = vmatmul.f32.gmra.mxu0 %v152
  %v473 = vpop.f32.mrf.mxu0
  %v474 = vadd.f32 0.0, %v473
  %475 = vmatmul.f32.gmra.mxu0 %v155
  %v476 = vpop.f32.mrf.mxu0
  %v477 = vadd.f32 0.0, %v476
  %478 = vmatmul.f32.gmra.mxu0 %v158
  %v479 = vpop.f32.mrf.mxu0
  %v480 = vadd.f32 0.0, %v479
  %481 = vmatmul.f32.gmra.mxu0 %v161
  %v482 = vpop.f32.mrf.mxu0
  %v483 = vadd.f32 0.0, %v482
  %484 = vmatmul.f32.gmra.mxu0 %v164
  %v485 = vpop.f32.mrf.mxu0
  %v486 = vadd.f32 0.0, %v485
  %487 = vmatmul.f32.gmra.mxu0 %v167
  %v488 = vpop.f32.mrf.mxu0
  %v489 = vadd.f32 0.0, %v488
  %490 = vmatmul.f32.gmra.mxu0 %v170
  %v491 = vpop.f32.mrf.mxu0
  %v492 = vadd.f32 0.0, %v491
  %493 = vmatmul.f32.gmra.mxu0 %v173
  %v494 = vpop.f32.mrf.mxu0
  %v495 = vadd.f32 0.0, %v494
  %496 = vmatmul.f32.gmra.mxu0 %v176
  %v497 = vpop.f32.mrf.mxu0
  %v498 = vadd.f32 0.0, %v497
  %499 = vmatmul.f32.gmra.mxu0 %v179
  %v500 = vpop.f32.mrf.mxu0
  %v501 = vadd.f32 0.0, %v500
  %502 = vmatmul.f32.gmra.mxu0 %v182
  %v503 = vpop.f32.mrf.mxu0
  %v504 = vadd.f32 0.0, %v503
  %505 = vmatmul.f32.gmra.mxu0 %v185
  %v506 = vpop.f32.mrf.mxu0
  %v507 = vadd.f32 0.0, %v506
  %508 = vmatmul.f32.gmra.mxu0 %v188
  %v509 = vpop.f32.mrf.mxu0
  %v510 = vadd.f32 0.0, %v509
  %511 = vmatmul.f32.gmra.mxu0 %v191
  %v512 = vpop.f32.mrf.mxu0
  %v513 = vadd.f32 0.0, %v512
  %514 = vmatmul.f32.gmra.mxu0 %v194
  %v515 = vpop.f32.mrf.mxu0
  %v516 = vadd.f32 0.0, %v515
  %517 = vmatmul.f32.gmra.mxu0 %v197
  %v518 = vpop.f32.mrf.mxu0
  %v519 = vadd.f32 0.0, %v518
  %520 = vmatmul.f32.gmra.mxu0 %v200
  %v521 = vpop.f32.mrf.mxu0
  %v522 = vadd.f32 0.0, %v521
  %523 = vmatmul.f32.gmra.mxu0 %v203
  %v524 = vpop.f32.mrf.mxu0
  %v525 = vadd.f32 0.0, %v524
  %526 = vmatmul.f32.gmra.mxu0 %v206
  %v527 = vpop.f32.mrf.mxu0
  %v528 = vadd.f32 0.0, %v527
  %529 = vmatmul.f32.gmra.mxu0 %v209
  %v530 = vpop.f32.mrf.mxu0
  %v531 = vadd.f32 0.0, %v530
  %532 = vmatmul.f32.gmra.mxu0 %v212
  %v533 = vpop.f32.mrf.mxu0
  %v534 = vadd.f32 0.0, %v533
  %535 = vmatmul.f32.gmra.mxu0 %v215
  %v536 = vpop.f32.mrf.mxu0
  %v537 = vadd.f32 0.0, %v536
  %538 = vmatmul.f32.gmra.mxu0 %v218
  %v539 = vpop.f32.mrf.mxu0
  %v540 = vadd.f32 0.0, %v539
  %541 = vmatmul.f32.gmra.mxu0 %v221
  %v542 = vpop.f32.mrf.mxu0
  %v543 = vadd.f32 0.0, %v542
  %544 = vmatmul.f32.gmra.mxu0 %v224
  %v545 = vpop.f32.mrf.mxu0
  %v546 = vadd.f32 0.0, %v545
  %547 = vdwg.mxu0
  %vm548 = vcmask 556032
  %v549 = vsel %vm548, %v405, 0.0
  %v550 = vadd.f32 %v244, %v549
  %551 = vadd.xlane.f32.xlu0 %v550
  %v552 = vpop.xlane.xlu0 %551
  %v553 = vsel %vm548, %v408, 0.0
  %v554 = vadd.f32 %v247, %v553
  %555 = vadd.xlane.f32.xlu0 %v554
  %v556 = vpop.xlane.xlu0 %555
  %v557 = vsel %vm548, %v411, 0.0
  %v558 = vadd.f32 %v250, %v557
  %559 = vadd.xlane.f32.xlu0 %v558
  %v560 = vpop.xlane.xlu0 %559
  %v561 = vsel %vm548, %v414, 0.0
  %v562 = vadd.f32 %v253, %v561
  %563 = vadd.xlane.f32.xlu0 %v562
  %v564 = vpop.xlane.xlu0 %563
  %v565 = vsel %vm548, %v417, 0.0
  %v566 = vadd.f32 %v256, %v565
  %567 = vadd.xlane.f32.xlu0 %v566
  %v568 = vpop.xlane.xlu0 %567
  %v569 = vsel %vm548, %v420, 0.0
  %v570 = vadd.f32 %v259, %v569
  %571 = vadd.xlane.f32.xlu0 %v570
  %v572 = vpop.xlane.xlu0 %571
  %v573 = vsel %vm548, %v423, 0.0
  %v574 = vadd.f32 %v262, %v573
  %575 = vadd.xlane.f32.xlu0 %v574
  %v576 = vpop.xlane.xlu0 %575
  %v577 = vsel %vm548, %v426, 0.0
  %v578 = vadd.f32 %v265, %v577
  %579 = vadd.xlane.f32.xlu0 %v578
  %v580 = vpop.xlane.xlu0 %579
  %v581 = vsel %vm548, %v429, 0.0
  %v582 = vadd.f32 %v268, %v581
  %583 = vadd.xlane.f32.xlu0 %v582
  %v584 = vpop.xlane.xlu0 %583
  %v585 = vsel %vm548, %v432, 0.0
  %v586 = vadd.f32 %v271, %v585
  %587 = vadd.xlane.f32.xlu0 %v586
  %v588 = vpop.xlane.xlu0 %587
  %v589 = vsel %vm548, %v435, 0.0
  %v590 = vadd.f32 %v274, %v589
  %591 = vadd.xlane.f32.xlu0 %v590
  %v592 = vpop.xlane.xlu0 %591
  %v593 = vsel %vm548, %v438, 0.0
  %v594 = vadd.f32 %v277, %v593
  %595 = vadd.xlane.f32.xlu0 %v594
  %v596 = vpop.xlane.xlu0 %595
  %v597 = vsel %vm548, %v441, 0.0
  %v598 = vadd.f32 %v280, %v597
  %599 = vadd.xlane.f32.xlu0 %v598
  %v600 = vpop.xlane.xlu0 %599
  %v601 = vsel %vm548, %v444, 0.0
  %v602 = vadd.f32 %v283, %v601
  %603 = vadd.xlane.f32.xlu0 %v602
  %v604 = vpop.xlane.xlu0 %603
  %v605 = vsel %vm548, %v447, 0.0
  %v606 = vadd.f32 %v286, %v605
  %607 = vadd.xlane.f32.xlu0 %v606
  %v608 = vpop.xlane.xlu0 %607
  %v609 = vsel %vm548, %v450, 0.0
  %v610 = vadd.f32 %v289, %v609
  %611 = vadd.xlane.f32.xlu0 %v610
  %v612 = vpop.xlane.xlu0 %611
  %v613 = vsel %vm548, %v453, 0.0
  %v614 = vadd.f32 %v292, %v613
  %615 = vadd.xlane.f32.xlu0 %v614
  %v616 = vpop.xlane.xlu0 %615
  %v617 = vsel %vm548, %v456, 0.0
  %v618 = vadd.f32 %v295, %v617
  %619 = vadd.xlane.f32.xlu0 %v618
  %v620 = vpop.xlane.xlu0 %619
  %v621 = vsel %vm548, %v459, 0.0
  %v622 = vadd.f32 %v298, %v621
  %623 = vadd.xlane.f32.xlu0 %v622
  %v624 = vpop.xlane.xlu0 %623
  %v625 = vsel %vm548, %v462, 0.0
  %v626 = vadd.f32 %v301, %v625
  %627 = vadd.xlane.f32.xlu0 %v626
  %v628 = vpop.xlane.xlu0 %627
  %v629 = vsel %vm548, %v465, 0.0
  %v630 = vadd.f32 %v304, %v629
  %631 = vadd.xlane.f32.xlu0 %v630
  %v632 = vpop.xlane.xlu0 %631
  %v633 = vsel %vm548, %v468, 0.0
  %v634 = vadd.f32 %v307, %v633
  %635 = vadd.xlane.f32.xlu0 %v634
  %v636 = vpop.xlane.xlu0 %635
  %v637 = vsel %vm548, %v471, 0.0
  %v638 = vadd.f32 %v310, %v637
  %639 = vadd.xlane.f32.xlu0 %v638
  %v640 = vpop.xlane.xlu0 %639
  %v641 = vsel %vm548, %v474, 0.0
  %v642 = vadd.f32 %v313, %v641
  %643 = vadd.xlane.f32.xlu0 %v642
  %v644 = vpop.xlane.xlu0 %643
  %v645 = vsel %vm548, %v477, 0.0
  %v646 = vadd.f32 %v316, %v645
  %647 = vadd.xlane.f32.xlu0 %v646
  %v648 = vpop.xlane.xlu0 %647
  %v649 = vsel %vm548, %v480, 0.0
  %v650 = vadd.f32 %v319, %v649
  %651 = vadd.xlane.f32.xlu0 %v650
  %v652 = vpop.xlane.xlu0 %651
  %v653 = vsel %vm548, %v483, 0.0
  %v654 = vadd.f32 %v322, %v653
  %655 = vadd.xlane.f32.xlu0 %v654
  %v656 = vpop.xlane.xlu0 %655
  %v657 = vsel %vm548, %v486, 0.0
  %v658 = vadd.f32 %v325, %v657
  %659 = vadd.xlane.f32.xlu0 %v658
  %v660 = vpop.xlane.xlu0 %659
  %v661 = vsel %vm548, %v489, 0.0
  %v662 = vadd.f32 %v328, %v661
  %663 = vadd.xlane.f32.xlu0 %v662
  %v664 = vpop.xlane.xlu0 %663
  %v665 = vsel %vm548, %v492, 0.0
  %v666 = vadd.f32 %v331, %v665
  %667 = vadd.xlane.f32.xlu0 %v666
  %v668 = vpop.xlane.xlu0 %667
  %v669 = vsel %vm548, %v495, 0.0
  %v670 = vadd.f32 %v334, %v669
  %671 = vadd.xlane.f32.xlu0 %v670
  %v672 = vpop.xlane.xlu0 %671
  %v673 = vsel %vm548, %v498, 0.0
  %v674 = vadd.f32 %v337, %v673
  %675 = vadd.xlane.f32.xlu0 %v674
  %v676 = vpop.xlane.xlu0 %675
  %v677 = vsel %vm548, %v501, 0.0
  %v678 = vadd.f32 %v340, %v677
  %679 = vadd.xlane.f32.xlu0 %v678
  %v680 = vpop.xlane.xlu0 %679
  %v681 = vsel %vm548, %v504, 0.0
  %v682 = vadd.f32 %v343, %v681
  %683 = vadd.xlane.f32.xlu0 %v682
  %v684 = vpop.xlane.xlu0 %683
  %v685 = vsel %vm548, %v507, 0.0
  %v686 = vadd.f32 %v346, %v685
  %687 = vadd.xlane.f32.xlu0 %v686
  %v688 = vpop.xlane.xlu0 %687
  %v689 = vsel %vm548, %v510, 0.0
  %v690 = vadd.f32 %v349, %v689
  %691 = vadd.xlane.f32.xlu0 %v690
  %v692 = vpop.xlane.xlu0 %691
  %v693 = vsel %vm548, %v513, 0.0
  %v694 = vadd.f32 %v352, %v693
  %695 = vadd.xlane.f32.xlu0 %v694
  %v696 = vpop.xlane.xlu0 %695
  %v697 = vsel %vm548, %v516, 0.0
  %v698 = vadd.f32 %v355, %v697
  %699 = vadd.xlane.f32.xlu0 %v698
  %v700 = vpop.xlane.xlu0 %699
  %v701 = vsel %vm548, %v519, 0.0
  %v702 = vadd.f32 %v358, %v701
  %703 = vadd.xlane.f32.xlu0 %v702
  %v704 = vpop.xlane.xlu0 %703
  %v705 = vsel %vm548, %v522, 0.0
  %v706 = vadd.f32 %v361, %v705
  %707 = vadd.xlane.f32.xlu0 %v706
  %v708 = vpop.xlane.xlu0 %707
  %v709 = vsel %vm548, %v525, 0.0
  %v710 = vadd.f32 %v364, %v709
  %711 = vadd.xlane.f32.xlu0 %v710
  %v712 = vpop.xlane.xlu0 %711
  %v713 = vsel %vm548, %v528, 0.0
  %v714 = vadd.f32 %v367, %v713
  %715 = vadd.xlane.f32.xlu0 %v714
  %v716 = vpop.xlane.xlu0 %715
  %v717 = vsel %vm548, %v531, 0.0
  %v718 = vadd.f32 %v370, %v717
  %719 = vadd.xlane.f32.xlu0 %v718
  %v720 = vpop.xlane.xlu0 %719
  %v721 = vsel %vm548, %v534, 0.0
  %v722 = vadd.f32 %v373, %v721
  %723 = vadd.xlane.f32.xlu0 %v722
  %v724 = vpop.xlane.xlu0 %723
  %v725 = vsel %vm548, %v537, 0.0
  %v726 = vadd.f32 %v376, %v725
  %727 = vadd.xlane.f32.xlu0 %v726
  %v728 = vpop.xlane.xlu0 %727
  %v729 = vsel %vm548, %v540, 0.0
  %v730 = vadd.f32 %v379, %v729
  %731 = vadd.xlane.f32.xlu0 %v730
  %v732 = vpop.xlane.xlu0 %731
  %v733 = vsel %vm548, %v543, 0.0
  %v734 = vadd.f32 %v382, %v733
  %735 = vadd.xlane.f32.xlu0 %v734
  %v736 = vpop.xlane.xlu0 %735
  %v737 = vsel %vm548, %v546, 0.0
  %v738 = vadd.f32 %v385, %v737
  %739 = vadd.xlane.f32.xlu0 %v738
  %v740 = vpop.xlane.xlu0 %739
  %v741 = vmul.f32 %v244, %v244
  %v742 = vmul.f32 %v405, %v405
  %v743 = vmul.f32 %v247, %v247
  %v744 = vmul.f32 %v408, %v408
  %v745 = vmul.f32 %v250, %v250
  %v746 = vmul.f32 %v411, %v411
  %v747 = vmul.f32 %v253, %v253
  %v748 = vmul.f32 %v414, %v414
  %v749 = vmul.f32 %v256, %v256
  %v750 = vmul.f32 %v417, %v417
  %v751 = vmul.f32 %v259, %v259
  %v752 = vmul.f32 %v420, %v420
  %v753 = vmul.f32 %v262, %v262
  %v754 = vmul.f32 %v423, %v423
  %v755 = vmul.f32 %v265, %v265
  %v756 = vmul.f32 %v426, %v426
  %v757 = vmul.f32 %v268, %v268
  %v758 = vmul.f32 %v429, %v429
  %v759 = vmul.f32 %v271, %v271
  %v760 = vmul.f32 %v432, %v432
  %v761 = vmul.f32 %v274, %v274
  %v762 = vmul.f32 %v435, %v435
  %v763 = vmul.f32 %v277, %v277
  %v764 = vmul.f32 %v438, %v438
  %v765 = vmul.f32 %v280, %v280
  %v766 = vmul.f32 %v441, %v441
  %v767 = vmul.f32 %v283, %v283
  %v768 = vmul.f32 %v444, %v444
  %v769 = vmul.f32 %v286, %v286
  %v770 = vmul.f32 %v447, %v447
  %v771 = vmul.f32 %v289, %v289
  %v772 = vmul.f32 %v450, %v450
  %v773 = vmul.f32 %v292, %v292
  %v774 = vmul.f32 %v453, %v453
  %v775 = vmul.f32 %v295, %v295
  %v776 = vmul.f32 %v456, %v456
  %v777 = vmul.f32 %v298, %v298
  %v778 = vmul.f32 %v459, %v459
  %v779 = vmul.f32 %v301, %v301
  %v780 = vmul.f32 %v462, %v462
  %v781 = vmul.f32 %v304, %v304
  %v782 = vmul.f32 %v465, %v465
  %v783 = vmul.f32 %v307, %v307
  %v784 = vmul.f32 %v468, %v468
  %v785 = vmul.f32 %v310, %v310
  %v786 = vmul.f32 %v471, %v471
  %v787 = vmul.f32 %v313, %v313
  %v788 = vmul.f32 %v474, %v474
  %v789 = vmul.f32 %v316, %v316
  %v790 = vmul.f32 %v477, %v477
  %v791 = vmul.f32 %v319, %v319
  %v792 = vmul.f32 %v480, %v480
  %v793 = vmul.f32 %v322, %v322
  %v794 = vmul.f32 %v483, %v483
  %v795 = vmul.f32 %v325, %v325
  %v796 = vmul.f32 %v486, %v486
  %v797 = vmul.f32 %v328, %v328
  %v798 = vmul.f32 %v489, %v489
  %v799 = vmul.f32 %v331, %v331
  %v800 = vmul.f32 %v492, %v492
  %v801 = vmul.f32 %v334, %v334
  %v802 = vmul.f32 %v495, %v495
  %v803 = vmul.f32 %v337, %v337
  %v804 = vmul.f32 %v498, %v498
  %v805 = vmul.f32 %v340, %v340
  %v806 = vmul.f32 %v501, %v501
  %v807 = vmul.f32 %v343, %v343
  %v808 = vmul.f32 %v504, %v504
  %v809 = vmul.f32 %v346, %v346
  %v810 = vmul.f32 %v507, %v507
  %v811 = vmul.f32 %v349, %v349
  %v812 = vmul.f32 %v510, %v510
  %v813 = vmul.f32 %v352, %v352
  %v814 = vmul.f32 %v513, %v513
  %v815 = vmul.f32 %v355, %v355
  %v816 = vmul.f32 %v516, %v516
  %v817 = vmul.f32 %v358, %v358
  %v818 = vmul.f32 %v519, %v519
  %v819 = vmul.f32 %v361, %v361
  %v820 = vmul.f32 %v522, %v522
  %v821 = vmul.f32 %v364, %v364
  %v822 = vmul.f32 %v525, %v525
  %v823 = vmul.f32 %v367, %v367
  %v824 = vmul.f32 %v528, %v528
  %v825 = vmul.f32 %v370, %v370
  %v826 = vmul.f32 %v531, %v531
  %v827 = vmul.f32 %v373, %v373
  %v828 = vmul.f32 %v534, %v534
  %v829 = vmul.f32 %v376, %v376
  %v830 = vmul.f32 %v537, %v537
  %v831 = vmul.f32 %v379, %v379
  %v832 = vmul.f32 %v540, %v540
  %v833 = vmul.f32 %v382, %v382
  %v834 = vmul.f32 %v543, %v543
  %v835 = vmul.f32 %v385, %v385
  %v836 = vmul.f32 %v546, %v546
  %v837 = vsel %vm548, %v742, 0.0
  %v838 = vadd.f32 %v741, %v837
  %839 = vadd.xlane.f32.xlu0 %v838
  %v840 = vpop.xlane.xlu0 %839
  %v841 = vsel %vm548, %v744, 0.0
  %v842 = vadd.f32 %v743, %v841
  %843 = vadd.xlane.f32.xlu0 %v842
  %v844 = vpop.xlane.xlu0 %843
  %v845 = vsel %vm548, %v746, 0.0
  %v846 = vadd.f32 %v745, %v845
  %847 = vadd.xlane.f32.xlu0 %v846
  %v848 = vpop.xlane.xlu0 %847
  %v849 = vsel %vm548, %v748, 0.0
  %v850 = vadd.f32 %v747, %v849
  %851 = vadd.xlane.f32.xlu0 %v850
  %v852 = vpop.xlane.xlu0 %851
  %v853 = vsel %vm548, %v750, 0.0
  %v854 = vadd.f32 %v749, %v853
  %855 = vadd.xlane.f32.xlu0 %v854
  %v856 = vpop.xlane.xlu0 %855
  %v857 = vsel %vm548, %v752, 0.0
  %v858 = vadd.f32 %v751, %v857
  %859 = vadd.xlane.f32.xlu0 %v858
  %v860 = vpop.xlane.xlu0 %859
  %v861 = vsel %vm548, %v754, 0.0
  %v862 = vadd.f32 %v753, %v861
  %863 = vadd.xlane.f32.xlu0 %v862
  %v864 = vpop.xlane.xlu0 %863
  %v865 = vsel %vm548, %v756, 0.0
  %v866 = vadd.f32 %v755, %v865
  %867 = vadd.xlane.f32.xlu0 %v866
  %v868 = vpop.xlane.xlu0 %867
  %v869 = vsel %vm548, %v758, 0.0
  %v870 = vadd.f32 %v757, %v869
  %871 = vadd.xlane.f32.xlu0 %v870
  %v872 = vpop.xlane.xlu0 %871
  %v873 = vsel %vm548, %v760, 0.0
  %v874 = vadd.f32 %v759, %v873
  %875 = vadd.xlane.f32.xlu0 %v874
  %v876 = vpop.xlane.xlu0 %875
  %v877 = vsel %vm548, %v762, 0.0
  %v878 = vadd.f32 %v761, %v877
  %879 = vadd.xlane.f32.xlu0 %v878
  %v880 = vpop.xlane.xlu0 %879
  %v881 = vsel %vm548, %v764, 0.0
  %v882 = vadd.f32 %v763, %v881
  %883 = vadd.xlane.f32.xlu0 %v882
  %v884 = vpop.xlane.xlu0 %883
  %v885 = vsel %vm548, %v766, 0.0
  %v886 = vadd.f32 %v765, %v885
  %887 = vadd.xlane.f32.xlu0 %v886
  %v888 = vpop.xlane.xlu0 %887
  %v889 = vsel %vm548, %v768, 0.0
  %v890 = vadd.f32 %v767, %v889
  %891 = vadd.xlane.f32.xlu0 %v890
  %v892 = vpop.xlane.xlu0 %891
  %v893 = vsel %vm548, %v770, 0.0
  %v894 = vadd.f32 %v769, %v893
  %895 = vadd.xlane.f32.xlu0 %v894
  %v896 = vpop.xlane.xlu0 %895
  %v897 = vsel %vm548, %v772, 0.0
  %v898 = vadd.f32 %v771, %v897
  %899 = vadd.xlane.f32.xlu0 %v898
  %v900 = vpop.xlane.xlu0 %899
  %v901 = vsel %vm548, %v774, 0.0
  %v902 = vadd.f32 %v773, %v901
  %903 = vadd.xlane.f32.xlu0 %v902
  %v904 = vpop.xlane.xlu0 %903
  %v905 = vsel %vm548, %v776, 0.0
  %v906 = vadd.f32 %v775, %v905
  %907 = vadd.xlane.f32.xlu0 %v906
  %v908 = vpop.xlane.xlu0 %907
  %v909 = vsel %vm548, %v778, 0.0
  %v910 = vadd.f32 %v777, %v909
  %911 = vadd.xlane.f32.xlu0 %v910
  %v912 = vpop.xlane.xlu0 %911
  %v913 = vsel %vm548, %v780, 0.0
  %v914 = vadd.f32 %v779, %v913
  %915 = vadd.xlane.f32.xlu0 %v914
  %v916 = vpop.xlane.xlu0 %915
  %v917 = vsel %vm548, %v782, 0.0
  %v918 = vadd.f32 %v781, %v917
  %919 = vadd.xlane.f32.xlu0 %v918
  %v920 = vpop.xlane.xlu0 %919
  %v921 = vsel %vm548, %v784, 0.0
  %v922 = vadd.f32 %v783, %v921
  %923 = vadd.xlane.f32.xlu0 %v922
  %v924 = vpop.xlane.xlu0 %923
  %v925 = vsel %vm548, %v786, 0.0
  %v926 = vadd.f32 %v785, %v925
  %927 = vadd.xlane.f32.xlu0 %v926
  %v928 = vpop.xlane.xlu0 %927
  %v929 = vsel %vm548, %v788, 0.0
  %v930 = vadd.f32 %v787, %v929
  %931 = vadd.xlane.f32.xlu0 %v930
  %v932 = vpop.xlane.xlu0 %931
  %v933 = vsel %vm548, %v790, 0.0
  %v934 = vadd.f32 %v789, %v933
  %935 = vadd.xlane.f32.xlu0 %v934
  %v936 = vpop.xlane.xlu0 %935
  %v937 = vsel %vm548, %v792, 0.0
  %v938 = vadd.f32 %v791, %v937
  %939 = vadd.xlane.f32.xlu0 %v938
  %v940 = vpop.xlane.xlu0 %939
  %v941 = vsel %vm548, %v794, 0.0
  %v942 = vadd.f32 %v793, %v941
  %943 = vadd.xlane.f32.xlu0 %v942
  %v944 = vpop.xlane.xlu0 %943
  %v945 = vsel %vm548, %v796, 0.0
  %v946 = vadd.f32 %v795, %v945
  %947 = vadd.xlane.f32.xlu0 %v946
  %v948 = vpop.xlane.xlu0 %947
  %v949 = vsel %vm548, %v798, 0.0
  %v950 = vadd.f32 %v797, %v949
  %951 = vadd.xlane.f32.xlu0 %v950
  %v952 = vpop.xlane.xlu0 %951
  %v953 = vsel %vm548, %v800, 0.0
  %v954 = vadd.f32 %v799, %v953
  %955 = vadd.xlane.f32.xlu0 %v954
  %v956 = vpop.xlane.xlu0 %955
  %v957 = vsel %vm548, %v802, 0.0
  %v958 = vadd.f32 %v801, %v957
  %959 = vadd.xlane.f32.xlu0 %v958
  %v960 = vpop.xlane.xlu0 %959
  %v961 = vsel %vm548, %v804, 0.0
  %v962 = vadd.f32 %v803, %v961
  %963 = vadd.xlane.f32.xlu0 %v962
  %v964 = vpop.xlane.xlu0 %963
  %v965 = vsel %vm548, %v806, 0.0
  %v966 = vadd.f32 %v805, %v965
  %967 = vadd.xlane.f32.xlu0 %v966
  %v968 = vpop.xlane.xlu0 %967
  %v969 = vsel %vm548, %v808, 0.0
  %v970 = vadd.f32 %v807, %v969
  %971 = vadd.xlane.f32.xlu0 %v970
  %v972 = vpop.xlane.xlu0 %971
  %v973 = vsel %vm548, %v810, 0.0
  %v974 = vadd.f32 %v809, %v973
  %975 = vadd.xlane.f32.xlu0 %v974
  %v976 = vpop.xlane.xlu0 %975
  %v977 = vsel %vm548, %v812, 0.0
  %v978 = vadd.f32 %v811, %v977
  %979 = vadd.xlane.f32.xlu0 %v978
  %v980 = vpop.xlane.xlu0 %979
  %v981 = vsel %vm548, %v814, 0.0
  %v982 = vadd.f32 %v813, %v981
  %983 = vadd.xlane.f32.xlu0 %v982
  %v984 = vpop.xlane.xlu0 %983
  %v985 = vsel %vm548, %v816, 0.0
  %v986 = vadd.f32 %v815, %v985
  %987 = vadd.xlane.f32.xlu0 %v986
  %v988 = vpop.xlane.xlu0 %987
  %v989 = vsel %vm548, %v818, 0.0
  %v990 = vadd.f32 %v817, %v989
  %991 = vadd.xlane.f32.xlu0 %v990
  %v992 = vpop.xlane.xlu0 %991
  %v993 = vsel %vm548, %v820, 0.0
  %v994 = vadd.f32 %v819, %v993
  %995 = vadd.xlane.f32.xlu0 %v994
  %v996 = vpop.xlane.xlu0 %995
  %v997 = vsel %vm548, %v822, 0.0
  %v998 = vadd.f32 %v821, %v997
  %999 = vadd.xlane.f32.xlu0 %v998
  %v1000 = vpop.xlane.xlu0 %999
  %v1001 = vsel %vm548, %v824, 0.0
  %v1002 = vadd.f32 %v823, %v1001
  %1003 = vadd.xlane.f32.xlu0 %v1002
  %v1004 = vpop.xlane.xlu0 %1003
  %v1005 = vsel %vm548, %v826, 0.0
  %v1006 = vadd.f32 %v825, %v1005
  %1007 = vadd.xlane.f32.xlu0 %v1006
  %v1008 = vpop.xlane.xlu0 %1007
  %v1009 = vsel %vm548, %v828, 0.0
  %v1010 = vadd.f32 %v827, %v1009
  %1011 = vadd.xlane.f32.xlu0 %v1010
  %v1012 = vpop.xlane.xlu0 %1011
  %v1013 = vsel %vm548, %v830, 0.0
  %v1014 = vadd.f32 %v829, %v1013
  %1015 = vadd.xlane.f32.xlu0 %v1014
  %v1016 = vpop.xlane.xlu0 %1015
  %v1017 = vsel %vm548, %v832, 0.0
  %v1018 = vadd.f32 %v831, %v1017
  %1019 = vadd.xlane.f32.xlu0 %v1018
  %v1020 = vpop.xlane.xlu0 %1019
  %v1021 = vsel %vm548, %v834, 0.0
  %v1022 = vadd.f32 %v833, %v1021
  %1023 = vadd.xlane.f32.xlu0 %v1022
  %v1024 = vpop.xlane.xlu0 %1023
  %v1025 = vsel %vm548, %v836, 0.0
  %v1026 = vadd.f32 %v835, %v1025
  %1027 = vadd.xlane.f32.xlu0 %v1026
  %v1028 = vpop.xlane.xlu0 %1027
  %v1029 = vmul.f32 %v552, 0.0051020407
  %v1030 = vmul.f32 %v556, 0.0051020407
  %v1031 = vmul.f32 %v560, 0.0051020407
  %v1032 = vmul.f32 %v564, 0.0051020407
  %v1033 = vmul.f32 %v568, 0.0051020407
  %v1034 = vmul.f32 %v572, 0.0051020407
  %v1035 = vmul.f32 %v576, 0.0051020407
  %v1036 = vmul.f32 %v580, 0.0051020407
  %v1037 = vmul.f32 %v584, 0.0051020407
  %v1038 = vmul.f32 %v588, 0.0051020407
  %v1039 = vmul.f32 %v592, 0.0051020407
  %v1040 = vmul.f32 %v596, 0.0051020407
  %v1041 = vmul.f32 %v600, 0.0051020407
  %v1042 = vmul.f32 %v604, 0.0051020407
  %v1043 = vmul.f32 %v608, 0.0051020407
  %v1044 = vmul.f32 %v612, 0.0051020407
  %v1045 = vmul.f32 %v616, 0.0051020407
  %v1046 = vmul.f32 %v620, 0.0051020407
  %v1047 = vmul.f32 %v624, 0.0051020407
  %v1048 = vmul.f32 %v628, 0.0051020407
  %v1049 = vmul.f32 %v632, 0.0051020407
  %v1050 = vmul.f32 %v636, 0.0051020407
  %v1051 = vmul.f32 %v640, 0.0051020407
  %v1052 = vmul.f32 %v644, 0.0051020407
  %v1053 = vmul.f32 %v648, 0.0051020407
  %v1054 = vmul.f32 %v652, 0.0051020407
  %v1055 = vmul.f32 %v656, 0.0051020407
  %v1056 = vmul.f32 %v660, 0.0051020407
  %v1057 = vmul.f32 %v664, 0.0051020407
  %v1058 = vmul.f32 %v668, 0.0051020407
  %v1059 = vmul.f32 %v672, 0.0051020407
  %v1060 = vmul.f32 %v676, 0.0051020407
  %v1061 = vmul.f32 %v680, 0.0051020407
  %v1062 = vmul.f32 %v684, 0.0051020407
  %v1063 = vmul.f32 %v688, 0.0051020407
  %v1064 = vmul.f32 %v692, 0.0051020407
  %v1065 = vmul.f32 %v696, 0.0051020407
  %v1066 = vmul.f32 %v700, 0.0051020407
  %v1067 = vmul.f32 %v704, 0.0051020407
  %v1068 = vmul.f32 %v708, 0.0051020407
  %v1069 = vmul.f32 %v712, 0.0051020407
  %v1070 = vmul.f32 %v716, 0.0051020407
  %v1071 = vmul.f32 %v720, 0.0051020407
  %v1072 = vmul.f32 %v724, 0.0051020407
  %v1073 = vmul.f32 %v728, 0.0051020407
  %v1074 = vmul.f32 %v732, 0.0051020407
  %v1075 = vmul.f32 %v736, 0.0051020407
  %v1076 = vmul.f32 %v740, 0.0051020407
  %v1077 = vmul.f32 %v840, 0.0051020407
  %v1078 = vmul.f32 %v844, 0.0051020407
  %v1079 = vmul.f32 %v848, 0.0051020407
  %v1080 = vmul.f32 %v852, 0.0051020407
  %v1081 = vmul.f32 %v856, 0.0051020407
  %v1082 = vmul.f32 %v860, 0.0051020407
  %v1083 = vmul.f32 %v864, 0.0051020407
  %v1084 = vmul.f32 %v868, 0.0051020407
  %v1085 = vmul.f32 %v872, 0.0051020407
  %v1086 = vmul.f32 %v876, 0.0051020407
  %v1087 = vmul.f32 %v880, 0.0051020407
  %v1088 = vmul.f32 %v884, 0.0051020407
  %v1089 = vmul.f32 %v888, 0.0051020407
  %v1090 = vmul.f32 %v892, 0.0051020407
  %v1091 = vmul.f32 %v896, 0.0051020407
  %v1092 = vmul.f32 %v900, 0.0051020407
  %v1093 = vmul.f32 %v904, 0.0051020407
  %v1094 = vmul.f32 %v908, 0.0051020407
  %v1095 = vmul.f32 %v912, 0.0051020407
  %v1096 = vmul.f32 %v916, 0.0051020407
  %v1097 = vmul.f32 %v920, 0.0051020407
  %v1098 = vmul.f32 %v924, 0.0051020407
  %v1099 = vmul.f32 %v928, 0.0051020407
  %v1100 = vmul.f32 %v932, 0.0051020407
  %v1101 = vmul.f32 %v936, 0.0051020407
  %v1102 = vmul.f32 %v940, 0.0051020407
  %v1103 = vmul.f32 %v944, 0.0051020407
  %v1104 = vmul.f32 %v948, 0.0051020407
  %v1105 = vmul.f32 %v952, 0.0051020407
  %v1106 = vmul.f32 %v956, 0.0051020407
  %v1107 = vmul.f32 %v960, 0.0051020407
  %v1108 = vmul.f32 %v964, 0.0051020407
  %v1109 = vmul.f32 %v968, 0.0051020407
  %v1110 = vmul.f32 %v972, 0.0051020407
  %v1111 = vmul.f32 %v976, 0.0051020407
  %v1112 = vmul.f32 %v980, 0.0051020407
  %v1113 = vmul.f32 %v984, 0.0051020407
  %v1114 = vmul.f32 %v988, 0.0051020407
  %v1115 = vmul.f32 %v992, 0.0051020407
  %v1116 = vmul.f32 %v996, 0.0051020407
  %v1117 = vmul.f32 %v1000, 0.0051020407
  %v1118 = vmul.f32 %v1004, 0.0051020407
  %v1119 = vmul.f32 %v1008, 0.0051020407
  %v1120 = vmul.f32 %v1012, 0.0051020407
  %v1121 = vmul.f32 %v1016, 0.0051020407
  %v1122 = vmul.f32 %v1020, 0.0051020407
  %v1123 = vmul.f32 %v1024, 0.0051020407
  %v1124 = vmul.f32 %v1028, 0.0051020407
  %v1125 = vmul.f32 %v1029, %v1029
  %v1126 = vmul.f32 %v1030, %v1030
  %v1127 = vmul.f32 %v1031, %v1031
  %v1128 = vmul.f32 %v1032, %v1032
  %v1129 = vmul.f32 %v1033, %v1033
  %v1130 = vmul.f32 %v1034, %v1034
  %v1131 = vmul.f32 %v1035, %v1035
  %v1132 = vmul.f32 %v1036, %v1036
  %v1133 = vmul.f32 %v1037, %v1037
  %v1134 = vmul.f32 %v1038, %v1038
  %v1135 = vmul.f32 %v1039, %v1039
  %v1136 = vmul.f32 %v1040, %v1040
  %v1137 = vmul.f32 %v1041, %v1041
  %v1138 = vmul.f32 %v1042, %v1042
  %v1139 = vmul.f32 %v1043, %v1043
  %v1140 = vmul.f32 %v1044, %v1044
  %v1141 = vmul.f32 %v1045, %v1045
  %v1142 = vmul.f32 %v1046, %v1046
  %v1143 = vmul.f32 %v1047, %v1047
  %v1144 = vmul.f32 %v1048, %v1048
  %v1145 = vmul.f32 %v1049, %v1049
  %v1146 = vmul.f32 %v1050, %v1050
  %v1147 = vmul.f32 %v1051, %v1051
  %v1148 = vmul.f32 %v1052, %v1052
  %v1149 = vmul.f32 %v1053, %v1053
  %v1150 = vmul.f32 %v1054, %v1054
  %v1151 = vmul.f32 %v1055, %v1055
  %v1152 = vmul.f32 %v1056, %v1056
  %v1153 = vmul.f32 %v1057, %v1057
  %v1154 = vmul.f32 %v1058, %v1058
  %v1155 = vmul.f32 %v1059, %v1059
  %v1156 = vmul.f32 %v1060, %v1060
  %v1157 = vmul.f32 %v1061, %v1061
  %v1158 = vmul.f32 %v1062, %v1062
  %v1159 = vmul.f32 %v1063, %v1063
  %v1160 = vmul.f32 %v1064, %v1064
  %v1161 = vmul.f32 %v1065, %v1065
  %v1162 = vmul.f32 %v1066, %v1066
  %v1163 = vmul.f32 %v1067, %v1067
  %v1164 = vmul.f32 %v1068, %v1068
  %v1165 = vmul.f32 %v1069, %v1069
  %v1166 = vmul.f32 %v1070, %v1070
  %v1167 = vmul.f32 %v1071, %v1071
  %v1168 = vmul.f32 %v1072, %v1072
  %v1169 = vmul.f32 %v1073, %v1073
  %v1170 = vmul.f32 %v1074, %v1074
  %v1171 = vmul.f32 %v1075, %v1075
  %v1172 = vmul.f32 %v1076, %v1076
  %v1173 = vsub.f32 %v1077, %v1125
  %v1174 = vsub.f32 %v1078, %v1126
  %v1175 = vsub.f32 %v1079, %v1127
  %v1176 = vsub.f32 %v1080, %v1128
  %v1177 = vsub.f32 %v1081, %v1129
  %v1178 = vsub.f32 %v1082, %v1130
  %v1179 = vsub.f32 %v1083, %v1131
  %v1180 = vsub.f32 %v1084, %v1132
  %v1181 = vsub.f32 %v1085, %v1133
  %v1182 = vsub.f32 %v1086, %v1134
  %v1183 = vsub.f32 %v1087, %v1135
  %v1184 = vsub.f32 %v1088, %v1136
  %v1185 = vsub.f32 %v1089, %v1137
  %v1186 = vsub.f32 %v1090, %v1138
  %v1187 = vsub.f32 %v1091, %v1139
  %v1188 = vsub.f32 %v1092, %v1140
  %v1189 = vsub.f32 %v1093, %v1141
  %v1190 = vsub.f32 %v1094, %v1142
  %v1191 = vsub.f32 %v1095, %v1143
  %v1192 = vsub.f32 %v1096, %v1144
  %v1193 = vsub.f32 %v1097, %v1145
  %v1194 = vsub.f32 %v1098, %v1146
  %v1195 = vsub.f32 %v1099, %v1147
  %v1196 = vsub.f32 %v1100, %v1148
  %v1197 = vsub.f32 %v1101, %v1149
  %v1198 = vsub.f32 %v1102, %v1150
  %v1199 = vsub.f32 %v1103, %v1151
  %v1200 = vsub.f32 %v1104, %v1152
  %v1201 = vsub.f32 %v1105, %v1153
  %v1202 = vsub.f32 %v1106, %v1154
  %v1203 = vsub.f32 %v1107, %v1155
  %v1204 = vsub.f32 %v1108, %v1156
  %v1205 = vsub.f32 %v1109, %v1157
  %v1206 = vsub.f32 %v1110, %v1158
  %v1207 = vsub.f32 %v1111, %v1159
  %v1208 = vsub.f32 %v1112, %v1160
  %v1209 = vsub.f32 %v1113, %v1161
  %v1210 = vsub.f32 %v1114, %v1162
  %v1211 = vsub.f32 %v1115, %v1163
  %v1212 = vsub.f32 %v1116, %v1164
  %v1213 = vsub.f32 %v1117, %v1165
  %v1214 = vsub.f32 %v1118, %v1166
  %v1215 = vsub.f32 %v1119, %v1167
  %v1216 = vsub.f32 %v1120, %v1168
  %v1217 = vsub.f32 %v1121, %v1169
  %v1218 = vsub.f32 %v1122, %v1170
  %v1219 = vsub.f32 %v1123, %v1171
  %v1220 = vsub.f32 %v1124, %v1172
  %v1221 = vld [vmem:[%s2] sm:$0xff]
  %v1222 = vld [vmem:[%s2 + $0x8] sm:$0xff]
  %v1223 = vld [vmem:[%s2 + $0x10] sm:$0xff]
  %v1224 = vld [vmem:[%s2 + $0x18] sm:$0xff]
  %v1225 = vld [vmem:[%s2 + $0x20] sm:$0xff]
  %v1226 = vld [vmem:[%s2 + $0x28] sm:$0xff]
  %v1227 = vld [vmem:[%s2 + $0x30] sm:$0xff]
  %v1228 = vld [vmem:[%s2 + $0x38] sm:$0xff]
  %v1229 = vld [vmem:[%s2 + $0x40] sm:$0xff]
  %v1230 = vld [vmem:[%s2 + $0x48] sm:$0xff]
  %v1231 = vld [vmem:[%s2 + $0x50] sm:$0xff]
  %v1232 = vld [vmem:[%s2 + $0x58] sm:$0xff]
  %v1233 = vld [vmem:[%s2 + $0x60] sm:$0xff]
  %v1234 = vld [vmem:[%s2 + $0x68] sm:$0xff]
  %v1235 = vld [vmem:[%s2 + $0x70] sm:$0xff]
  %v1236 = vld [vmem:[%s2 + $0x78] sm:$0xff]
  %v1237 = vld [vmem:[%s2 + $0x80] sm:$0xff]
  %v1238 = vld [vmem:[%s2 + $0x88] sm:$0xff]
  %v1239 = vld [vmem:[%s2 + $0x90] sm:$0xff]
  %v1240 = vld [vmem:[%s2 + $0x98] sm:$0xff]
  %v1241 = vld [vmem:[%s2 + $0xa0] sm:$0xff]
  %v1242 = vld [vmem:[%s2 + $0xa8] sm:$0xff]
  %v1243 = vld [vmem:[%s2 + $0xb0] sm:$0xff]
  %v1244 = vld [vmem:[%s2 + $0xb8] sm:$0xff]
  %v1245 = vld [vmem:[%s2 + $0xc0] sm:$0xff]
  %v1246 = vld [vmem:[%s2 + $0xc8] sm:$0xff]
  %v1247 = vld [vmem:[%s2 + $0xd0] sm:$0xff]
  %v1248 = vld [vmem:[%s2 + $0xd8] sm:$0xff]
  %v1249 = vld [vmem:[%s2 + $0xe0] sm:$0xff]
  %v1250 = vld [vmem:[%s2 + $0xe8] sm:$0xff]
  %v1251 = vld [vmem:[%s2 + $0xf0] sm:$0xff]
  %v1252 = vld [vmem:[%s2 + $0xf8] sm:$0xff]
  %v1253 = vld [vmem:[%s2 + $0x100] sm:$0xff]
  %v1254 = vld [vmem:[%s2 + $0x108] sm:$0xff]
  %v1255 = vld [vmem:[%s2 + $0x110] sm:$0xff]
  %v1256 = vld [vmem:[%s2 + $0x118] sm:$0xff]
  %v1257 = vld [vmem:[%s2 + $0x120] sm:$0xff]
  %v1258 = vld [vmem:[%s2 + $0x128] sm:$0xff]
  %v1259 = vld [vmem:[%s2 + $0x130] sm:$0xff]
  %v1260 = vld [vmem:[%s2 + $0x138] sm:$0xff]
  %v1261 = vld [vmem:[%s2 + $0x140] sm:$0xff]
  %v1262 = vld [vmem:[%s2 + $0x148] sm:$0xff]
  %v1263 = vld [vmem:[%s2 + $0x150] sm:$0xff]
  %v1264 = vld [vmem:[%s2 + $0x158] sm:$0xff]
  %v1265 = vld [vmem:[%s2 + $0x160] sm:$0xff]
  %v1266 = vld [vmem:[%s2 + $0x168] sm:$0xff]
  %v1267 = vld [vmem:[%s2 + $0x170] sm:$0xff]
  %v1268 = vld [vmem:[%s2 + $0x178] sm:$0xff]
  %v1269 = vadd.f32 %v1173, 1e-05
  %v1270 = vadd.f32 %v1174, 1e-05
  %v1271 = vadd.f32 %v1175, 1e-05
  %v1272 = vadd.f32 %v1176, 1e-05
  %v1273 = vadd.f32 %v1177, 1e-05
  %v1274 = vadd.f32 %v1178, 1e-05
  %v1275 = vadd.f32 %v1179, 1e-05
  %v1276 = vadd.f32 %v1180, 1e-05
  %v1277 = vadd.f32 %v1181, 1e-05
  %v1278 = vadd.f32 %v1182, 1e-05
  %v1279 = vadd.f32 %v1183, 1e-05
  %v1280 = vadd.f32 %v1184, 1e-05
  %v1281 = vadd.f32 %v1185, 1e-05
  %v1282 = vadd.f32 %v1186, 1e-05
  %v1283 = vadd.f32 %v1187, 1e-05
  %v1284 = vadd.f32 %v1188, 1e-05
  %v1285 = vadd.f32 %v1189, 1e-05
  %v1286 = vadd.f32 %v1190, 1e-05
  %v1287 = vadd.f32 %v1191, 1e-05
  %v1288 = vadd.f32 %v1192, 1e-05
  %v1289 = vadd.f32 %v1193, 1e-05
  %v1290 = vadd.f32 %v1194, 1e-05
  %v1291 = vadd.f32 %v1195, 1e-05
  %v1292 = vadd.f32 %v1196, 1e-05
  %v1293 = vadd.f32 %v1197, 1e-05
  %v1294 = vadd.f32 %v1198, 1e-05
  %v1295 = vadd.f32 %v1199, 1e-05
  %v1296 = vadd.f32 %v1200, 1e-05
  %v1297 = vadd.f32 %v1201, 1e-05
  %v1298 = vadd.f32 %v1202, 1e-05
  %v1299 = vadd.f32 %v1203, 1e-05
  %v1300 = vadd.f32 %v1204, 1e-05
  %v1301 = vadd.f32 %v1205, 1e-05
  %v1302 = vadd.f32 %v1206, 1e-05
  %v1303 = vadd.f32 %v1207, 1e-05
  %v1304 = vadd.f32 %v1208, 1e-05
  %v1305 = vadd.f32 %v1209, 1e-05
  %v1306 = vadd.f32 %v1210, 1e-05
  %v1307 = vadd.f32 %v1211, 1e-05
  %v1308 = vadd.f32 %v1212, 1e-05
  %v1309 = vadd.f32 %v1213, 1e-05
  %v1310 = vadd.f32 %v1214, 1e-05
  %v1311 = vadd.f32 %v1215, 1e-05
  %v1312 = vadd.f32 %v1216, 1e-05
  %v1313 = vadd.f32 %v1217, 1e-05
  %v1314 = vadd.f32 %v1218, 1e-05
  %v1315 = vadd.f32 %v1219, 1e-05
  %v1316 = vadd.f32 %v1220, 1e-05
  %v1317 = vrsqrt.pop %v1269
  %v1318 = vmul.f32 %v1317, %v1269
  %v1319 = vmul.f32 %v1318, %v1317
  %v1320 = vmul.f32 0.5, %v1319
  %v1321 = vsub.f32 1.5, %v1320
  %v1322 = vmul.f32 %v1317, %v1321
  %vm1323 = vweird.f32 %v1269
  %vm1324 = vweird.f32 %v1317
  %vm1325 = vmor %vm1323, %vm1324
  %v1326 = vsel %vm1325, %v1317, %v1322
  %v1327 = vrsqrt.pop %v1270
  %v1328 = vmul.f32 %v1327, %v1270
  %v1329 = vmul.f32 %v1328, %v1327
  %v1330 = vmul.f32 0.5, %v1329
  %v1331 = vsub.f32 1.5, %v1330
  %v1332 = vmul.f32 %v1327, %v1331
  %vm1333 = vweird.f32 %v1270
  %vm1334 = vweird.f32 %v1327
  %vm1335 = vmor %vm1333, %vm1334
  %v1336 = vsel %vm1335, %v1327, %v1332
  %v1337 = vrsqrt.pop %v1271
  %v1338 = vmul.f32 %v1337, %v1271
  %v1339 = vmul.f32 %v1338, %v1337
  %v1340 = vmul.f32 0.5, %v1339
  %v1341 = vsub.f32 1.5, %v1340
  %v1342 = vmul.f32 %v1337, %v1341
  %vm1343 = vweird.f32 %v1271
  %vm1344 = vweird.f32 %v1337
  %vm1345 = vmor %vm1343, %vm1344
  %v1346 = vsel %vm1345, %v1337, %v1342
  %v1347 = vrsqrt.pop %v1272
  %v1348 = vmul.f32 %v1347, %v1272
  %v1349 = vmul.f32 %v1348, %v1347
  %v1350 = vmul.f32 0.5, %v1349
  %v1351 = vsub.f32 1.5, %v1350
  %v1352 = vmul.f32 %v1347, %v1351
  %vm1353 = vweird.f32 %v1272
  %vm1354 = vweird.f32 %v1347
  %vm1355 = vmor %vm1353, %vm1354
  %v1356 = vsel %vm1355, %v1347, %v1352
  %v1357 = vrsqrt.pop %v1273
  %v1358 = vmul.f32 %v1357, %v1273
  %v1359 = vmul.f32 %v1358, %v1357
  %v1360 = vmul.f32 0.5, %v1359
  %v1361 = vsub.f32 1.5, %v1360
  %v1362 = vmul.f32 %v1357, %v1361
  %vm1363 = vweird.f32 %v1273
  %vm1364 = vweird.f32 %v1357
  %vm1365 = vmor %vm1363, %vm1364
  %v1366 = vsel %vm1365, %v1357, %v1362
  %v1367 = vrsqrt.pop %v1274
  %v1368 = vmul.f32 %v1367, %v1274
  %v1369 = vmul.f32 %v1368, %v1367
  %v1370 = vmul.f32 0.5, %v1369
  %v1371 = vsub.f32 1.5, %v1370
  %v1372 = vmul.f32 %v1367, %v1371
  %vm1373 = vweird.f32 %v1274
  %vm1374 = vweird.f32 %v1367
  %vm1375 = vmor %vm1373, %vm1374
  %v1376 = vsel %vm1375, %v1367, %v1372
  %v1377 = vrsqrt.pop %v1275
  %v1378 = vmul.f32 %v1377, %v1275
  %v1379 = vmul.f32 %v1378, %v1377
  %v1380 = vmul.f32 0.5, %v1379
  %v1381 = vsub.f32 1.5, %v1380
  %v1382 = vmul.f32 %v1377, %v1381
  %vm1383 = vweird.f32 %v1275
  %vm1384 = vweird.f32 %v1377
  %vm1385 = vmor %vm1383, %vm1384
  %v1386 = vsel %vm1385, %v1377, %v1382
  %v1387 = vrsqrt.pop %v1276
  %v1388 = vmul.f32 %v1387, %v1276
  %v1389 = vmul.f32 %v1388, %v1387
  %v1390 = vmul.f32 0.5, %v1389
  %v1391 = vsub.f32 1.5, %v1390
  %v1392 = vmul.f32 %v1387, %v1391
  %vm1393 = vweird.f32 %v1276
  %vm1394 = vweird.f32 %v1387
  %vm1395 = vmor %vm1393, %vm1394
  %v1396 = vsel %vm1395, %v1387, %v1392
  %v1397 = vrsqrt.pop %v1277
  %v1398 = vmul.f32 %v1397, %v1277
  %v1399 = vmul.f32 %v1398, %v1397
  %v1400 = vmul.f32 0.5, %v1399
  %v1401 = vsub.f32 1.5, %v1400
  %v1402 = vmul.f32 %v1397, %v1401
  %vm1403 = vweird.f32 %v1277
  %vm1404 = vweird.f32 %v1397
  %vm1405 = vmor %vm1403, %vm1404
  %v1406 = vsel %vm1405, %v1397, %v1402
  %v1407 = vrsqrt.pop %v1278
  %v1408 = vmul.f32 %v1407, %v1278
  %v1409 = vmul.f32 %v1408, %v1407
  %v1410 = vmul.f32 0.5, %v1409
  %v1411 = vsub.f32 1.5, %v1410
  %v1412 = vmul.f32 %v1407, %v1411
  %vm1413 = vweird.f32 %v1278
  %vm1414 = vweird.f32 %v1407
  %vm1415 = vmor %vm1413, %vm1414
  %v1416 = vsel %vm1415, %v1407, %v1412
  %v1417 = vrsqrt.pop %v1279
  %v1418 = vmul.f32 %v1417, %v1279
  %v1419 = vmul.f32 %v1418, %v1417
  %v1420 = vmul.f32 0.5, %v1419
  %v1421 = vsub.f32 1.5, %v1420
  %v1422 = vmul.f32 %v1417, %v1421
  %vm1423 = vweird.f32 %v1279
  %vm1424 = vweird.f32 %v1417
  %vm1425 = vmor %vm1423, %vm1424
  %v1426 = vsel %vm1425, %v1417, %v1422
  %v1427 = vrsqrt.pop %v1280
  %v1428 = vmul.f32 %v1427, %v1280
  %v1429 = vmul.f32 %v1428, %v1427
  %v1430 = vmul.f32 0.5, %v1429
  %v1431 = vsub.f32 1.5, %v1430
  %v1432 = vmul.f32 %v1427, %v1431
  %vm1433 = vweird.f32 %v1280
  %vm1434 = vweird.f32 %v1427
  %vm1435 = vmor %vm1433, %vm1434
  %v1436 = vsel %vm1435, %v1427, %v1432
  %v1437 = vrsqrt.pop %v1281
  %v1438 = vmul.f32 %v1437, %v1281
  %v1439 = vmul.f32 %v1438, %v1437
  %v1440 = vmul.f32 0.5, %v1439
  %v1441 = vsub.f32 1.5, %v1440
  %v1442 = vmul.f32 %v1437, %v1441
  %vm1443 = vweird.f32 %v1281
  %vm1444 = vweird.f32 %v1437
  %vm1445 = vmor %vm1443, %vm1444
  %v1446 = vsel %vm1445, %v1437, %v1442
  %v1447 = vrsqrt.pop %v1282
  %v1448 = vmul.f32 %v1447, %v1282
  %v1449 = vmul.f32 %v1448, %v1447
  %v1450 = vmul.f32 0.5, %v1449
  %v1451 = vsub.f32 1.5, %v1450
  %v1452 = vmul.f32 %v1447, %v1451
  %vm1453 = vweird.f32 %v1282
  %vm1454 = vweird.f32 %v1447
  %vm1455 = vmor %vm1453, %vm1454
  %v1456 = vsel %vm1455, %v1447, %v1452
  %v1457 = vrsqrt.pop %v1283
  %v1458 = vmul.f32 %v1457, %v1283
  %v1459 = vmul.f32 %v1458, %v1457
  %v1460 = vmul.f32 0.5, %v1459
  %v1461 = vsub.f32 1.5, %v1460
  %v1462 = vmul.f32 %v1457, %v1461
  %vm1463 = vweird.f32 %v1283
  %vm1464 = vweird.f32 %v1457
  %vm1465 = vmor %vm1463, %vm1464
  %v1466 = vsel %vm1465, %v1457, %v1462
  %v1467 = vrsqrt.pop %v1284
  %v1468 = vmul.f32 %v1467, %v1284
  %v1469 = vmul.f32 %v1468, %v1467
  %v1470 = vmul.f32 0.5, %v1469
  %v1471 = vsub.f32 1.5, %v1470
  %v1472 = vmul.f32 %v1467, %v1471
  %vm1473 = vweird.f32 %v1284
  %vm1474 = vweird.f32 %v1467
  %vm1475 = vmor %vm1473, %vm1474
  %v1476 = vsel %vm1475, %v1467, %v1472
  %v1477 = vrsqrt.pop %v1285
  %v1478 = vmul.f32 %v1477, %v1285
  %v1479 = vmul.f32 %v1478, %v1477
  %v1480 = vmul.f32 0.5, %v1479
  %v1481 = vsub.f32 1.5, %v1480
  %v1482 = vmul.f32 %v1477, %v1481
  %vm1483 = vweird.f32 %v1285
  %vm1484 = vweird.f32 %v1477
  %vm1485 = vmor %vm1483, %vm1484
  %v1486 = vsel %vm1485, %v1477, %v1482
  %v1487 = vrsqrt.pop %v1286
  %v1488 = vmul.f32 %v1487, %v1286
  %v1489 = vmul.f32 %v1488, %v1487
  %v1490 = vmul.f32 0.5, %v1489
  %v1491 = vsub.f32 1.5, %v1490
  %v1492 = vmul.f32 %v1487, %v1491
  %vm1493 = vweird.f32 %v1286
  %vm1494 = vweird.f32 %v1487
  %vm1495 = vmor %vm1493, %vm1494
  %v1496 = vsel %vm1495, %v1487, %v1492
  %v1497 = vrsqrt.pop %v1287
  %v1498 = vmul.f32 %v1497, %v1287
  %v1499 = vmul.f32 %v1498, %v1497
  %v1500 = vmul.f32 0.5, %v1499
  %v1501 = vsub.f32 1.5, %v1500
  %v1502 = vmul.f32 %v1497, %v1501
  %vm1503 = vweird.f32 %v1287
  %vm1504 = vweird.f32 %v1497
  %vm1505 = vmor %vm1503, %vm1504
  %v1506 = vsel %vm1505, %v1497, %v1502
  %v1507 = vrsqrt.pop %v1288
  %v1508 = vmul.f32 %v1507, %v1288
  %v1509 = vmul.f32 %v1508, %v1507
  %v1510 = vmul.f32 0.5, %v1509
  %v1511 = vsub.f32 1.5, %v1510
  %v1512 = vmul.f32 %v1507, %v1511
  %vm1513 = vweird.f32 %v1288
  %vm1514 = vweird.f32 %v1507
  %vm1515 = vmor %vm1513, %vm1514
  %v1516 = vsel %vm1515, %v1507, %v1512
  %v1517 = vrsqrt.pop %v1289
  %v1518 = vmul.f32 %v1517, %v1289
  %v1519 = vmul.f32 %v1518, %v1517
  %v1520 = vmul.f32 0.5, %v1519
  %v1521 = vsub.f32 1.5, %v1520
  %v1522 = vmul.f32 %v1517, %v1521
  %vm1523 = vweird.f32 %v1289
  %vm1524 = vweird.f32 %v1517
  %vm1525 = vmor %vm1523, %vm1524
  %v1526 = vsel %vm1525, %v1517, %v1522
  %v1527 = vrsqrt.pop %v1290
  %v1528 = vmul.f32 %v1527, %v1290
  %v1529 = vmul.f32 %v1528, %v1527
  %v1530 = vmul.f32 0.5, %v1529
  %v1531 = vsub.f32 1.5, %v1530
  %v1532 = vmul.f32 %v1527, %v1531
  %vm1533 = vweird.f32 %v1290
  %vm1534 = vweird.f32 %v1527
  %vm1535 = vmor %vm1533, %vm1534
  %v1536 = vsel %vm1535, %v1527, %v1532
  %v1537 = vrsqrt.pop %v1291
  %v1538 = vmul.f32 %v1537, %v1291
  %v1539 = vmul.f32 %v1538, %v1537
  %v1540 = vmul.f32 0.5, %v1539
  %v1541 = vsub.f32 1.5, %v1540
  %v1542 = vmul.f32 %v1537, %v1541
  %vm1543 = vweird.f32 %v1291
  %vm1544 = vweird.f32 %v1537
  %vm1545 = vmor %vm1543, %vm1544
  %v1546 = vsel %vm1545, %v1537, %v1542
  %v1547 = vrsqrt.pop %v1292
  %v1548 = vmul.f32 %v1547, %v1292
  %v1549 = vmul.f32 %v1548, %v1547
  %v1550 = vmul.f32 0.5, %v1549
  %v1551 = vsub.f32 1.5, %v1550
  %v1552 = vmul.f32 %v1547, %v1551
  %vm1553 = vweird.f32 %v1292
  %vm1554 = vweird.f32 %v1547
  %vm1555 = vmor %vm1553, %vm1554
  %v1556 = vsel %vm1555, %v1547, %v1552
  %v1557 = vrsqrt.pop %v1293
  %v1558 = vmul.f32 %v1557, %v1293
  %v1559 = vmul.f32 %v1558, %v1557
  %v1560 = vmul.f32 0.5, %v1559
  %v1561 = vsub.f32 1.5, %v1560
  %v1562 = vmul.f32 %v1557, %v1561
  %vm1563 = vweird.f32 %v1293
  %vm1564 = vweird.f32 %v1557
  %vm1565 = vmor %vm1563, %vm1564
  %v1566 = vsel %vm1565, %v1557, %v1562
  %v1567 = vrsqrt.pop %v1294
  %v1568 = vmul.f32 %v1567, %v1294
  %v1569 = vmul.f32 %v1568, %v1567
  %v1570 = vmul.f32 0.5, %v1569
  %v1571 = vsub.f32 1.5, %v1570
  %v1572 = vmul.f32 %v1567, %v1571
  %vm1573 = vweird.f32 %v1294
  %vm1574 = vweird.f32 %v1567
  %vm1575 = vmor %vm1573, %vm1574
  %v1576 = vsel %vm1575, %v1567, %v1572
  %v1577 = vrsqrt.pop %v1295
  %v1578 = vmul.f32 %v1577, %v1295
  %v1579 = vmul.f32 %v1578, %v1577
  %v1580 = vmul.f32 0.5, %v1579
  %v1581 = vsub.f32 1.5, %v1580
  %v1582 = vmul.f32 %v1577, %v1581
  %vm1583 = vweird.f32 %v1295
  %vm1584 = vweird.f32 %v1577
  %vm1585 = vmor %vm1583, %vm1584
  %v1586 = vsel %vm1585, %v1577, %v1582
  %v1587 = vrsqrt.pop %v1296
  %v1588 = vmul.f32 %v1587, %v1296
  %v1589 = vmul.f32 %v1588, %v1587
  %v1590 = vmul.f32 0.5, %v1589
  %v1591 = vsub.f32 1.5, %v1590
  %v1592 = vmul.f32 %v1587, %v1591
  %vm1593 = vweird.f32 %v1296
  %vm1594 = vweird.f32 %v1587
  %vm1595 = vmor %vm1593, %vm1594
  %v1596 = vsel %vm1595, %v1587, %v1592
  %v1597 = vrsqrt.pop %v1297
  %v1598 = vmul.f32 %v1597, %v1297
  %v1599 = vmul.f32 %v1598, %v1597
  %v1600 = vmul.f32 0.5, %v1599
  %v1601 = vsub.f32 1.5, %v1600
  %v1602 = vmul.f32 %v1597, %v1601
  %vm1603 = vweird.f32 %v1297
  %vm1604 = vweird.f32 %v1597
  %vm1605 = vmor %vm1603, %vm1604
  %v1606 = vsel %vm1605, %v1597, %v1602
  %v1607 = vrsqrt.pop %v1298
  %v1608 = vmul.f32 %v1607, %v1298
  %v1609 = vmul.f32 %v1608, %v1607
  %v1610 = vmul.f32 0.5, %v1609
  %v1611 = vsub.f32 1.5, %v1610
  %v1612 = vmul.f32 %v1607, %v1611
  %vm1613 = vweird.f32 %v1298
  %vm1614 = vweird.f32 %v1607
  %vm1615 = vmor %vm1613, %vm1614
  %v1616 = vsel %vm1615, %v1607, %v1612
  %v1617 = vrsqrt.pop %v1299
  %v1618 = vmul.f32 %v1617, %v1299
  %v1619 = vmul.f32 %v1618, %v1617
  %v1620 = vmul.f32 0.5, %v1619
  %v1621 = vsub.f32 1.5, %v1620
  %v1622 = vmul.f32 %v1617, %v1621
  %vm1623 = vweird.f32 %v1299
  %vm1624 = vweird.f32 %v1617
  %vm1625 = vmor %vm1623, %vm1624
  %v1626 = vsel %vm1625, %v1617, %v1622
  %v1627 = vrsqrt.pop %v1300
  %v1628 = vmul.f32 %v1627, %v1300
  %v1629 = vmul.f32 %v1628, %v1627
  %v1630 = vmul.f32 0.5, %v1629
  %v1631 = vsub.f32 1.5, %v1630
  %v1632 = vmul.f32 %v1627, %v1631
  %vm1633 = vweird.f32 %v1300
  %vm1634 = vweird.f32 %v1627
  %vm1635 = vmor %vm1633, %vm1634
  %v1636 = vsel %vm1635, %v1627, %v1632
  %v1637 = vrsqrt.pop %v1301
  %v1638 = vmul.f32 %v1637, %v1301
  %v1639 = vmul.f32 %v1638, %v1637
  %v1640 = vmul.f32 0.5, %v1639
  %v1641 = vsub.f32 1.5, %v1640
  %v1642 = vmul.f32 %v1637, %v1641
  %vm1643 = vweird.f32 %v1301
  %vm1644 = vweird.f32 %v1637
  %vm1645 = vmor %vm1643, %vm1644
  %v1646 = vsel %vm1645, %v1637, %v1642
  %v1647 = vrsqrt.pop %v1302
  %v1648 = vmul.f32 %v1647, %v1302
  %v1649 = vmul.f32 %v1648, %v1647
  %v1650 = vmul.f32 0.5, %v1649
  %v1651 = vsub.f32 1.5, %v1650
  %v1652 = vmul.f32 %v1647, %v1651
  %vm1653 = vweird.f32 %v1302
  %vm1654 = vweird.f32 %v1647
  %vm1655 = vmor %vm1653, %vm1654
  %v1656 = vsel %vm1655, %v1647, %v1652
  %v1657 = vrsqrt.pop %v1303
  %v1658 = vmul.f32 %v1657, %v1303
  %v1659 = vmul.f32 %v1658, %v1657
  %v1660 = vmul.f32 0.5, %v1659
  %v1661 = vsub.f32 1.5, %v1660
  %v1662 = vmul.f32 %v1657, %v1661
  %vm1663 = vweird.f32 %v1303
  %vm1664 = vweird.f32 %v1657
  %vm1665 = vmor %vm1663, %vm1664
  %v1666 = vsel %vm1665, %v1657, %v1662
  %v1667 = vrsqrt.pop %v1304
  %v1668 = vmul.f32 %v1667, %v1304
  %v1669 = vmul.f32 %v1668, %v1667
  %v1670 = vmul.f32 0.5, %v1669
  %v1671 = vsub.f32 1.5, %v1670
  %v1672 = vmul.f32 %v1667, %v1671
  %vm1673 = vweird.f32 %v1304
  %vm1674 = vweird.f32 %v1667
  %vm1675 = vmor %vm1673, %vm1674
  %v1676 = vsel %vm1675, %v1667, %v1672
  %v1677 = vrsqrt.pop %v1305
  %v1678 = vmul.f32 %v1677, %v1305
  %v1679 = vmul.f32 %v1678, %v1677
  %v1680 = vmul.f32 0.5, %v1679
  %v1681 = vsub.f32 1.5, %v1680
  %v1682 = vmul.f32 %v1677, %v1681
  %vm1683 = vweird.f32 %v1305
  %vm1684 = vweird.f32 %v1677
  %vm1685 = vmor %vm1683, %vm1684
  %v1686 = vsel %vm1685, %v1677, %v1682
  %v1687 = vrsqrt.pop %v1306
  %v1688 = vmul.f32 %v1687, %v1306
  %v1689 = vmul.f32 %v1688, %v1687
  %v1690 = vmul.f32 0.5, %v1689
  %v1691 = vsub.f32 1.5, %v1690
  %v1692 = vmul.f32 %v1687, %v1691
  %vm1693 = vweird.f32 %v1306
  %vm1694 = vweird.f32 %v1687
  %vm1695 = vmor %vm1693, %vm1694
  %v1696 = vsel %vm1695, %v1687, %v1692
  %v1697 = vrsqrt.pop %v1307
  %v1698 = vmul.f32 %v1697, %v1307
  %v1699 = vmul.f32 %v1698, %v1697
  %v1700 = vmul.f32 0.5, %v1699
  %v1701 = vsub.f32 1.5, %v1700
  %v1702 = vmul.f32 %v1697, %v1701
  %vm1703 = vweird.f32 %v1307
  %vm1704 = vweird.f32 %v1697
  %vm1705 = vmor %vm1703, %vm1704
  %v1706 = vsel %vm1705, %v1697, %v1702
  %v1707 = vrsqrt.pop %v1308
  %v1708 = vmul.f32 %v1707, %v1308
  %v1709 = vmul.f32 %v1708, %v1707
  %v1710 = vmul.f32 0.5, %v1709
  %v1711 = vsub.f32 1.5, %v1710
  %v1712 = vmul.f32 %v1707, %v1711
  %vm1713 = vweird.f32 %v1308
  %vm1714 = vweird.f32 %v1707
  %vm1715 = vmor %vm1713, %vm1714
  %v1716 = vsel %vm1715, %v1707, %v1712
  %v1717 = vrsqrt.pop %v1309
  %v1718 = vmul.f32 %v1717, %v1309
  %v1719 = vmul.f32 %v1718, %v1717
  %v1720 = vmul.f32 0.5, %v1719
  %v1721 = vsub.f32 1.5, %v1720
  %v1722 = vmul.f32 %v1717, %v1721
  %vm1723 = vweird.f32 %v1309
  %vm1724 = vweird.f32 %v1717
  %vm1725 = vmor %vm1723, %vm1724
  %v1726 = vsel %vm1725, %v1717, %v1722
  %v1727 = vrsqrt.pop %v1310
  %v1728 = vmul.f32 %v1727, %v1310
  %v1729 = vmul.f32 %v1728, %v1727
  %v1730 = vmul.f32 0.5, %v1729
  %v1731 = vsub.f32 1.5, %v1730
  %v1732 = vmul.f32 %v1727, %v1731
  %vm1733 = vweird.f32 %v1310
  %vm1734 = vweird.f32 %v1727
  %vm1735 = vmor %vm1733, %vm1734
  %v1736 = vsel %vm1735, %v1727, %v1732
  %v1737 = vrsqrt.pop %v1311
  %v1738 = vmul.f32 %v1737, %v1311
  %v1739 = vmul.f32 %v1738, %v1737
  %v1740 = vmul.f32 0.5, %v1739
  %v1741 = vsub.f32 1.5, %v1740
  %v1742 = vmul.f32 %v1737, %v1741
  %vm1743 = vweird.f32 %v1311
  %vm1744 = vweird.f32 %v1737
  %vm1745 = vmor %vm1743, %vm1744
  %v1746 = vsel %vm1745, %v1737, %v1742
  %v1747 = vrsqrt.pop %v1312
  %v1748 = vmul.f32 %v1747, %v1312
  %v1749 = vmul.f32 %v1748, %v1747
  %v1750 = vmul.f32 0.5, %v1749
  %v1751 = vsub.f32 1.5, %v1750
  %v1752 = vmul.f32 %v1747, %v1751
  %vm1753 = vweird.f32 %v1312
  %vm1754 = vweird.f32 %v1747
  %vm1755 = vmor %vm1753, %vm1754
  %v1756 = vsel %vm1755, %v1747, %v1752
  %v1757 = vrsqrt.pop %v1313
  %v1758 = vmul.f32 %v1757, %v1313
  %v1759 = vmul.f32 %v1758, %v1757
  %v1760 = vmul.f32 0.5, %v1759
  %v1761 = vsub.f32 1.5, %v1760
  %v1762 = vmul.f32 %v1757, %v1761
  %vm1763 = vweird.f32 %v1313
  %vm1764 = vweird.f32 %v1757
  %vm1765 = vmor %vm1763, %vm1764
  %v1766 = vsel %vm1765, %v1757, %v1762
  %v1767 = vrsqrt.pop %v1314
  %v1768 = vmul.f32 %v1767, %v1314
  %v1769 = vmul.f32 %v1768, %v1767
  %v1770 = vmul.f32 0.5, %v1769
  %v1771 = vsub.f32 1.5, %v1770
  %v1772 = vmul.f32 %v1767, %v1771
  %vm1773 = vweird.f32 %v1314
  %vm1774 = vweird.f32 %v1767
  %vm1775 = vmor %vm1773, %vm1774
  %v1776 = vsel %vm1775, %v1767, %v1772
  %v1777 = vrsqrt.pop %v1315
  %v1778 = vmul.f32 %v1777, %v1315
  %v1779 = vmul.f32 %v1778, %v1777
  %v1780 = vmul.f32 0.5, %v1779
  %v1781 = vsub.f32 1.5, %v1780
  %v1782 = vmul.f32 %v1777, %v1781
  %vm1783 = vweird.f32 %v1315
  %vm1784 = vweird.f32 %v1777
  %vm1785 = vmor %vm1783, %vm1784
  %v1786 = vsel %vm1785, %v1777, %v1782
  %v1787 = vrsqrt.pop %v1316
  %v1788 = vmul.f32 %v1787, %v1316
  %v1789 = vmul.f32 %v1788, %v1787
  %v1790 = vmul.f32 0.5, %v1789
  %v1791 = vsub.f32 1.5, %v1790
  %v1792 = vmul.f32 %v1787, %v1791
  %vm1793 = vweird.f32 %v1316
  %vm1794 = vweird.f32 %v1787
  %vm1795 = vmor %vm1793, %vm1794
  %v1796 = vsel %vm1795, %v1787, %v1792
  %v1797 = vmul.f32 %v1221, %v1326
  %v1798 = vmul.f32 %v1222, %v1336
  %v1799 = vmul.f32 %v1223, %v1346
  %v1800 = vmul.f32 %v1224, %v1356
  %v1801 = vmul.f32 %v1225, %v1366
  %v1802 = vmul.f32 %v1226, %v1376
  %v1803 = vmul.f32 %v1227, %v1386
  %v1804 = vmul.f32 %v1228, %v1396
  %v1805 = vmul.f32 %v1229, %v1406
  %v1806 = vmul.f32 %v1230, %v1416
  %v1807 = vmul.f32 %v1231, %v1426
  %v1808 = vmul.f32 %v1232, %v1436
  %v1809 = vmul.f32 %v1233, %v1446
  %v1810 = vmul.f32 %v1234, %v1456
  %v1811 = vmul.f32 %v1235, %v1466
  %v1812 = vmul.f32 %v1236, %v1476
  %v1813 = vmul.f32 %v1237, %v1486
  %v1814 = vmul.f32 %v1238, %v1496
  %v1815 = vmul.f32 %v1239, %v1506
  %v1816 = vmul.f32 %v1240, %v1516
  %v1817 = vmul.f32 %v1241, %v1526
  %v1818 = vmul.f32 %v1242, %v1536
  %v1819 = vmul.f32 %v1243, %v1546
  %v1820 = vmul.f32 %v1244, %v1556
  %v1821 = vmul.f32 %v1245, %v1566
  %v1822 = vmul.f32 %v1246, %v1576
  %v1823 = vmul.f32 %v1247, %v1586
  %v1824 = vmul.f32 %v1248, %v1596
  %v1825 = vmul.f32 %v1249, %v1606
  %v1826 = vmul.f32 %v1250, %v1616
  %v1827 = vmul.f32 %v1251, %v1626
  %v1828 = vmul.f32 %v1252, %v1636
  %v1829 = vmul.f32 %v1253, %v1646
  %v1830 = vmul.f32 %v1254, %v1656
  %v1831 = vmul.f32 %v1255, %v1666
  %v1832 = vmul.f32 %v1256, %v1676
  %v1833 = vmul.f32 %v1257, %v1686
  %v1834 = vmul.f32 %v1258, %v1696
  %v1835 = vmul.f32 %v1259, %v1706
  %v1836 = vmul.f32 %v1260, %v1716
  %v1837 = vmul.f32 %v1261, %v1726
  %v1838 = vmul.f32 %v1262, %v1736
  %v1839 = vmul.f32 %v1263, %v1746
  %v1840 = vmul.f32 %v1264, %v1756
  %v1841 = vmul.f32 %v1265, %v1766
  %v1842 = vmul.f32 %v1266, %v1776
  %v1843 = vmul.f32 %v1267, %v1786
  %v1844 = vmul.f32 %v1268, %v1796
  %v1845 = vld [vmem:[%s3] sm:$0xff]
  %v1846 = vld [vmem:[%s3 + $0x8] sm:$0xff]
  %v1847 = vld [vmem:[%s3 + $0x10] sm:$0xff]
  %v1848 = vld [vmem:[%s3 + $0x18] sm:$0xff]
  %v1849 = vld [vmem:[%s3 + $0x20] sm:$0xff]
  %v1850 = vld [vmem:[%s3 + $0x28] sm:$0xff]
  %v1851 = vld [vmem:[%s3 + $0x30] sm:$0xff]
  %v1852 = vld [vmem:[%s3 + $0x38] sm:$0xff]
  %v1853 = vld [vmem:[%s3 + $0x40] sm:$0xff]
  %v1854 = vld [vmem:[%s3 + $0x48] sm:$0xff]
  %v1855 = vld [vmem:[%s3 + $0x50] sm:$0xff]
  %v1856 = vld [vmem:[%s3 + $0x58] sm:$0xff]
  %v1857 = vld [vmem:[%s3 + $0x60] sm:$0xff]
  %v1858 = vld [vmem:[%s3 + $0x68] sm:$0xff]
  %v1859 = vld [vmem:[%s3 + $0x70] sm:$0xff]
  %v1860 = vld [vmem:[%s3 + $0x78] sm:$0xff]
  %v1861 = vld [vmem:[%s3 + $0x80] sm:$0xff]
  %v1862 = vld [vmem:[%s3 + $0x88] sm:$0xff]
  %v1863 = vld [vmem:[%s3 + $0x90] sm:$0xff]
  %v1864 = vld [vmem:[%s3 + $0x98] sm:$0xff]
  %v1865 = vld [vmem:[%s3 + $0xa0] sm:$0xff]
  %v1866 = vld [vmem:[%s3 + $0xa8] sm:$0xff]
  %v1867 = vld [vmem:[%s3 + $0xb0] sm:$0xff]
  %v1868 = vld [vmem:[%s3 + $0xb8] sm:$0xff]
  %v1869 = vld [vmem:[%s3 + $0xc0] sm:$0xff]
  %v1870 = vld [vmem:[%s3 + $0xc8] sm:$0xff]
  %v1871 = vld [vmem:[%s3 + $0xd0] sm:$0xff]
  %v1872 = vld [vmem:[%s3 + $0xd8] sm:$0xff]
  %v1873 = vld [vmem:[%s3 + $0xe0] sm:$0xff]
  %v1874 = vld [vmem:[%s3 + $0xe8] sm:$0xff]
  %v1875 = vld [vmem:[%s3 + $0xf0] sm:$0xff]
  %v1876 = vld [vmem:[%s3 + $0xf8] sm:$0xff]
  %v1877 = vld [vmem:[%s3 + $0x100] sm:$0xff]
  %v1878 = vld [vmem:[%s3 + $0x108] sm:$0xff]
  %v1879 = vld [vmem:[%s3 + $0x110] sm:$0xff]
  %v1880 = vld [vmem:[%s3 + $0x118] sm:$0xff]
  %v1881 = vld [vmem:[%s3 + $0x120] sm:$0xff]
  %v1882 = vld [vmem:[%s3 + $0x128] sm:$0xff]
  %v1883 = vld [vmem:[%s3 + $0x130] sm:$0xff]
  %v1884 = vld [vmem:[%s3 + $0x138] sm:$0xff]
  %v1885 = vld [vmem:[%s3 + $0x140] sm:$0xff]
  %v1886 = vld [vmem:[%s3 + $0x148] sm:$0xff]
  %v1887 = vld [vmem:[%s3 + $0x150] sm:$0xff]
  %v1888 = vld [vmem:[%s3 + $0x158] sm:$0xff]
  %v1889 = vld [vmem:[%s3 + $0x160] sm:$0xff]
  %v1890 = vld [vmem:[%s3 + $0x168] sm:$0xff]
  %v1891 = vld [vmem:[%s3 + $0x170] sm:$0xff]
  %v1892 = vld [vmem:[%s3 + $0x178] sm:$0xff]
  %v1893 = vmul.f32 %v1029, %v1797
  %v1894 = vmul.f32 %v1030, %v1798
  %v1895 = vmul.f32 %v1031, %v1799
  %v1896 = vmul.f32 %v1032, %v1800
  %v1897 = vmul.f32 %v1033, %v1801
  %v1898 = vmul.f32 %v1034, %v1802
  %v1899 = vmul.f32 %v1035, %v1803
  %v1900 = vmul.f32 %v1036, %v1804
  %v1901 = vmul.f32 %v1037, %v1805
  %v1902 = vmul.f32 %v1038, %v1806
  %v1903 = vmul.f32 %v1039, %v1807
  %v1904 = vmul.f32 %v1040, %v1808
  %v1905 = vmul.f32 %v1041, %v1809
  %v1906 = vmul.f32 %v1042, %v1810
  %v1907 = vmul.f32 %v1043, %v1811
  %v1908 = vmul.f32 %v1044, %v1812
  %v1909 = vmul.f32 %v1045, %v1813
  %v1910 = vmul.f32 %v1046, %v1814
  %v1911 = vmul.f32 %v1047, %v1815
  %v1912 = vmul.f32 %v1048, %v1816
  %v1913 = vmul.f32 %v1049, %v1817
  %v1914 = vmul.f32 %v1050, %v1818
  %v1915 = vmul.f32 %v1051, %v1819
  %v1916 = vmul.f32 %v1052, %v1820
  %v1917 = vmul.f32 %v1053, %v1821
  %v1918 = vmul.f32 %v1054, %v1822
  %v1919 = vmul.f32 %v1055, %v1823
  %v1920 = vmul.f32 %v1056, %v1824
  %v1921 = vmul.f32 %v1057, %v1825
  %v1922 = vmul.f32 %v1058, %v1826
  %v1923 = vmul.f32 %v1059, %v1827
  %v1924 = vmul.f32 %v1060, %v1828
  %v1925 = vmul.f32 %v1061, %v1829
  %v1926 = vmul.f32 %v1062, %v1830
  %v1927 = vmul.f32 %v1063, %v1831
  %v1928 = vmul.f32 %v1064, %v1832
  %v1929 = vmul.f32 %v1065, %v1833
  %v1930 = vmul.f32 %v1066, %v1834
  %v1931 = vmul.f32 %v1067, %v1835
  %v1932 = vmul.f32 %v1068, %v1836
  %v1933 = vmul.f32 %v1069, %v1837
  %v1934 = vmul.f32 %v1070, %v1838
  %v1935 = vmul.f32 %v1071, %v1839
  %v1936 = vmul.f32 %v1072, %v1840
  %v1937 = vmul.f32 %v1073, %v1841
  %v1938 = vmul.f32 %v1074, %v1842
  %v1939 = vmul.f32 %v1075, %v1843
  %v1940 = vmul.f32 %v1076, %v1844
  %v1941 = vsub.f32 %v1845, %v1893
  %v1942 = vsub.f32 %v1846, %v1894
  %v1943 = vsub.f32 %v1847, %v1895
  %v1944 = vsub.f32 %v1848, %v1896
  %v1945 = vsub.f32 %v1849, %v1897
  %v1946 = vsub.f32 %v1850, %v1898
  %v1947 = vsub.f32 %v1851, %v1899
  %v1948 = vsub.f32 %v1852, %v1900
  %v1949 = vsub.f32 %v1853, %v1901
  %v1950 = vsub.f32 %v1854, %v1902
  %v1951 = vsub.f32 %v1855, %v1903
  %v1952 = vsub.f32 %v1856, %v1904
  %v1953 = vsub.f32 %v1857, %v1905
  %v1954 = vsub.f32 %v1858, %v1906
  %v1955 = vsub.f32 %v1859, %v1907
  %v1956 = vsub.f32 %v1860, %v1908
  %v1957 = vsub.f32 %v1861, %v1909
  %v1958 = vsub.f32 %v1862, %v1910
  %v1959 = vsub.f32 %v1863, %v1911
  %v1960 = vsub.f32 %v1864, %v1912
  %v1961 = vsub.f32 %v1865, %v1913
  %v1962 = vsub.f32 %v1866, %v1914
  %v1963 = vsub.f32 %v1867, %v1915
  %v1964 = vsub.f32 %v1868, %v1916
  %v1965 = vsub.f32 %v1869, %v1917
  %v1966 = vsub.f32 %v1870, %v1918
  %v1967 = vsub.f32 %v1871, %v1919
  %v1968 = vsub.f32 %v1872, %v1920
  %v1969 = vsub.f32 %v1873, %v1921
  %v1970 = vsub.f32 %v1874, %v1922
  %v1971 = vsub.f32 %v1875, %v1923
  %v1972 = vsub.f32 %v1876, %v1924
  %v1973 = vsub.f32 %v1877, %v1925
  %v1974 = vsub.f32 %v1878, %v1926
  %v1975 = vsub.f32 %v1879, %v1927
  %v1976 = vsub.f32 %v1880, %v1928
  %v1977 = vsub.f32 %v1881, %v1929
  %v1978 = vsub.f32 %v1882, %v1930
  %v1979 = vsub.f32 %v1883, %v1931
  %v1980 = vsub.f32 %v1884, %v1932
  %v1981 = vsub.f32 %v1885, %v1933
  %v1982 = vsub.f32 %v1886, %v1934
  %v1983 = vsub.f32 %v1887, %v1935
  %v1984 = vsub.f32 %v1888, %v1936
  %v1985 = vsub.f32 %v1889, %v1937
  %v1986 = vsub.f32 %v1890, %v1938
  %v1987 = vsub.f32 %v1891, %v1939
  %v1988 = vsub.f32 %v1892, %v1940
  %1990 = vset.pattern.permute.xlu0 0
  %1991 = vperm.xlu0 %1990, %v1797
  %v1992 = vpop.permute.xlu0 %1991
  %1995 = vset.pattern.permute.xlu0 0
  %1996 = vperm.xlu0 %1995, %v1798
  %v1997 = vpop.permute.xlu0 %1996
  %2000 = vset.pattern.permute.xlu0 0
  %2001 = vperm.xlu0 %2000, %v1799
  %v2002 = vpop.permute.xlu0 %2001
  %2005 = vset.pattern.permute.xlu0 0
  %2006 = vperm.xlu0 %2005, %v1800
  %v2007 = vpop.permute.xlu0 %2006
  %2010 = vset.pattern.permute.xlu0 0
  %2011 = vperm.xlu0 %2010, %v1801
  %v2012 = vpop.permute.xlu0 %2011
  %2015 = vset.pattern.permute.xlu0 0
  %2016 = vperm.xlu0 %2015, %v1802
  %v2017 = vpop.permute.xlu0 %2016
  %2020 = vset.pattern.permute.xlu0 0
  %2021 = vperm.xlu0 %2020, %v1803
  %v2022 = vpop.permute.xlu0 %2021
  %2025 = vset.pattern.permute.xlu0 0
  %2026 = vperm.xlu0 %2025, %v1804
  %v2027 = vpop.permute.xlu0 %2026
  %2030 = vset.pattern.permute.xlu0 0
  %2031 = vperm.xlu0 %2030, %v1805
  %v2032 = vpop.permute.xlu0 %2031
  %2035 = vset.pattern.permute.xlu0 0
  %2036 = vperm.xlu0 %2035, %v1806
  %v2037 = vpop.permute.xlu0 %2036
  %2040 = vset.pattern.permute.xlu0 0
  %2041 = vperm.xlu0 %2040, %v1807
  %v2042 = vpop.permute.xlu0 %2041
  %2045 = vset.pattern.permute.xlu0 0
  %2046 = vperm.xlu0 %2045, %v1808
  %v2047 = vpop.permute.xlu0 %2046
  %2050 = vset.pattern.permute.xlu0 0
  %2051 = vperm.xlu0 %2050, %v1809
  %v2052 = vpop.permute.xlu0 %2051
  %2055 = vset.pattern.permute.xlu0 0
  %2056 = vperm.xlu0 %2055, %v1810
  %v2057 = vpop.permute.xlu0 %2056
  %2060 = vset.pattern.permute.xlu0 0
  %2061 = vperm.xlu0 %2060, %v1811
  %v2062 = vpop.permute.xlu0 %2061
  %2065 = vset.pattern.permute.xlu0 0
  %2066 = vperm.xlu0 %2065, %v1812
  %v2067 = vpop.permute.xlu0 %2066
  %2070 = vset.pattern.permute.xlu0 0
  %2071 = vperm.xlu0 %2070, %v1813
  %v2072 = vpop.permute.xlu0 %2071
  %2075 = vset.pattern.permute.xlu0 0
  %2076 = vperm.xlu0 %2075, %v1814
  %v2077 = vpop.permute.xlu0 %2076
  %2080 = vset.pattern.permute.xlu0 0
  %2081 = vperm.xlu0 %2080, %v1815
  %v2082 = vpop.permute.xlu0 %2081
  %2085 = vset.pattern.permute.xlu0 0
  %2086 = vperm.xlu0 %2085, %v1816
  %v2087 = vpop.permute.xlu0 %2086
  %2090 = vset.pattern.permute.xlu0 0
  %2091 = vperm.xlu0 %2090, %v1817
  %v2092 = vpop.permute.xlu0 %2091
  %2095 = vset.pattern.permute.xlu0 0
  %2096 = vperm.xlu0 %2095, %v1818
  %v2097 = vpop.permute.xlu0 %2096
  %2100 = vset.pattern.permute.xlu0 0
  %2101 = vperm.xlu0 %2100, %v1819
  %v2102 = vpop.permute.xlu0 %2101
  %2105 = vset.pattern.permute.xlu0 0
  %2106 = vperm.xlu0 %2105, %v1820
  %v2107 = vpop.permute.xlu0 %2106
  %2110 = vset.pattern.permute.xlu0 0
  %2111 = vperm.xlu0 %2110, %v1821
  %v2112 = vpop.permute.xlu0 %2111
  %2115 = vset.pattern.permute.xlu0 0
  %2116 = vperm.xlu0 %2115, %v1822
  %v2117 = vpop.permute.xlu0 %2116
  %2120 = vset.pattern.permute.xlu0 0
  %2121 = vperm.xlu0 %2120, %v1823
  %v2122 = vpop.permute.xlu0 %2121
  %2125 = vset.pattern.permute.xlu0 0
  %2126 = vperm.xlu0 %2125, %v1824
  %v2127 = vpop.permute.xlu0 %2126
  %2130 = vset.pattern.permute.xlu0 0
  %2131 = vperm.xlu0 %2130, %v1825
  %v2132 = vpop.permute.xlu0 %2131
  %2135 = vset.pattern.permute.xlu0 0
  %2136 = vperm.xlu0 %2135, %v1826
  %v2137 = vpop.permute.xlu0 %2136
  %2140 = vset.pattern.permute.xlu0 0
  %2141 = vperm.xlu0 %2140, %v1827
  %v2142 = vpop.permute.xlu0 %2141
  %2145 = vset.pattern.permute.xlu0 0
  %2146 = vperm.xlu0 %2145, %v1828
  %v2147 = vpop.permute.xlu0 %2146
  %2150 = vset.pattern.permute.xlu0 0
  %2151 = vperm.xlu0 %2150, %v1829
  %v2152 = vpop.permute.xlu0 %2151
  %2155 = vset.pattern.permute.xlu0 0
  %2156 = vperm.xlu0 %2155, %v1830
  %v2157 = vpop.permute.xlu0 %2156
  %2160 = vset.pattern.permute.xlu0 0
  %2161 = vperm.xlu0 %2160, %v1831
  %v2162 = vpop.permute.xlu0 %2161
  %2165 = vset.pattern.permute.xlu0 0
  %2166 = vperm.xlu0 %2165, %v1832
  %v2167 = vpop.permute.xlu0 %2166
  %2170 = vset.pattern.permute.xlu0 0
  %2171 = vperm.xlu0 %2170, %v1833
  %v2172 = vpop.permute.xlu0 %2171
  %2175 = vset.pattern.permute.xlu0 0
  %2176 = vperm.xlu0 %2175, %v1834
  %v2177 = vpop.permute.xlu0 %2176
  %2180 = vset.pattern.permute.xlu0 0
  %2181 = vperm.xlu0 %2180, %v1835
  %v2182 = vpop.permute.xlu0 %2181
  %2185 = vset.pattern.permute.xlu0 0
  %2186 = vperm.xlu0 %2185, %v1836
  %v2187 = vpop.permute.xlu0 %2186
  %2190 = vset.pattern.permute.xlu0 0
  %2191 = vperm.xlu0 %2190, %v1837
  %v2192 = vpop.permute.xlu0 %2191
  %2195 = vset.pattern.permute.xlu0 0
  %2196 = vperm.xlu0 %2195, %v1838
  %v2197 = vpop.permute.xlu0 %2196
  %2200 = vset.pattern.permute.xlu0 0
  %2201 = vperm.xlu0 %2200, %v1839
  %v2202 = vpop.permute.xlu0 %2201
  %2205 = vset.pattern.permute.xlu0 0
  %2206 = vperm.xlu0 %2205, %v1840
  %v2207 = vpop.permute.xlu0 %2206
  %2210 = vset.pattern.permute.xlu0 0
  %2211 = vperm.xlu0 %2210, %v1841
  %v2212 = vpop.permute.xlu0 %2211
  %2215 = vset.pattern.permute.xlu0 0
  %2216 = vperm.xlu0 %2215, %v1842
  %v2217 = vpop.permute.xlu0 %2216
  %2220 = vset.pattern.permute.xlu0 0
  %2221 = vperm.xlu0 %2220, %v1843
  %v2222 = vpop.permute.xlu0 %2221
  %2225 = vset.pattern.permute.xlu0 0
  %2226 = vperm.xlu0 %2225, %v1844
  %v2227 = vpop.permute.xlu0 %2226
  %v2229 = vmul.f32 %v244, %v1992
  %v2230 = vmul.f32 %v405, %v1992
  %v2231 = vmul.f32 %v247, %v1997
  %v2232 = vmul.f32 %v408, %v1997
  %v2233 = vmul.f32 %v250, %v2002
  %v2234 = vmul.f32 %v411, %v2002
  %v2235 = vmul.f32 %v253, %v2007
  %v2236 = vmul.f32 %v414, %v2007
  %v2237 = vmul.f32 %v256, %v2012
  %v2238 = vmul.f32 %v417, %v2012
  %v2239 = vmul.f32 %v259, %v2017
  %v2240 = vmul.f32 %v420, %v2017
  %v2241 = vmul.f32 %v262, %v2022
  %v2242 = vmul.f32 %v423, %v2022
  %v2243 = vmul.f32 %v265, %v2027
  %v2244 = vmul.f32 %v426, %v2027
  %v2245 = vmul.f32 %v268, %v2032
  %v2246 = vmul.f32 %v429, %v2032
  %v2247 = vmul.f32 %v271, %v2037
  %v2248 = vmul.f32 %v432, %v2037
  %v2249 = vmul.f32 %v274, %v2042
  %v2250 = vmul.f32 %v435, %v2042
  %v2251 = vmul.f32 %v277, %v2047
  %v2252 = vmul.f32 %v438, %v2047
  %v2253 = vmul.f32 %v280, %v2052
  %v2254 = vmul.f32 %v441, %v2052
  %v2255 = vmul.f32 %v283, %v2057
  %v2256 = vmul.f32 %v444, %v2057
  %v2257 = vmul.f32 %v286, %v2062
  %v2258 = vmul.f32 %v447, %v2062
  %v2259 = vmul.f32 %v289, %v2067
  %v2260 = vmul.f32 %v450, %v2067
  %v2261 = vmul.f32 %v292, %v2072
  %v2262 = vmul.f32 %v453, %v2072
  %v2263 = vmul.f32 %v295, %v2077
  %v2264 = vmul.f32 %v456, %v2077
  %v2265 = vmul.f32 %v298, %v2082
  %v2266 = vmul.f32 %v459, %v2082
  %v2267 = vmul.f32 %v301, %v2087
  %v2268 = vmul.f32 %v462, %v2087
  %v2269 = vmul.f32 %v304, %v2092
  %v2270 = vmul.f32 %v465, %v2092
  %v2271 = vmul.f32 %v307, %v2097
  %v2272 = vmul.f32 %v468, %v2097
  %v2273 = vmul.f32 %v310, %v2102
  %v2274 = vmul.f32 %v471, %v2102
  %v2275 = vmul.f32 %v313, %v2107
  %v2276 = vmul.f32 %v474, %v2107
  %v2277 = vmul.f32 %v316, %v2112
  %v2278 = vmul.f32 %v477, %v2112
  %v2279 = vmul.f32 %v319, %v2117
  %v2280 = vmul.f32 %v480, %v2117
  %v2281 = vmul.f32 %v322, %v2122
  %v2282 = vmul.f32 %v483, %v2122
  %v2283 = vmul.f32 %v325, %v2127
  %v2284 = vmul.f32 %v486, %v2127
  %v2285 = vmul.f32 %v328, %v2132
  %v2286 = vmul.f32 %v489, %v2132
  %v2287 = vmul.f32 %v331, %v2137
  %v2288 = vmul.f32 %v492, %v2137
  %v2289 = vmul.f32 %v334, %v2142
  %v2290 = vmul.f32 %v495, %v2142
  %v2291 = vmul.f32 %v337, %v2147
  %v2292 = vmul.f32 %v498, %v2147
  %v2293 = vmul.f32 %v340, %v2152
  %v2294 = vmul.f32 %v501, %v2152
  %v2295 = vmul.f32 %v343, %v2157
  %v2296 = vmul.f32 %v504, %v2157
  %v2297 = vmul.f32 %v346, %v2162
  %v2298 = vmul.f32 %v507, %v2162
  %v2299 = vmul.f32 %v349, %v2167
  %v2300 = vmul.f32 %v510, %v2167
  %v2301 = vmul.f32 %v352, %v2172
  %v2302 = vmul.f32 %v513, %v2172
  %v2303 = vmul.f32 %v355, %v2177
  %v2304 = vmul.f32 %v516, %v2177
  %v2305 = vmul.f32 %v358, %v2182
  %v2306 = vmul.f32 %v519, %v2182
  %v2307 = vmul.f32 %v361, %v2187
  %v2308 = vmul.f32 %v522, %v2187
  %v2309 = vmul.f32 %v364, %v2192
  %v2310 = vmul.f32 %v525, %v2192
  %v2311 = vmul.f32 %v367, %v2197
  %v2312 = vmul.f32 %v528, %v2197
  %v2313 = vmul.f32 %v370, %v2202
  %v2314 = vmul.f32 %v531, %v2202
  %v2315 = vmul.f32 %v373, %v2207
  %v2316 = vmul.f32 %v534, %v2207
  %v2317 = vmul.f32 %v376, %v2212
  %v2318 = vmul.f32 %v537, %v2212
  %v2319 = vmul.f32 %v379, %v2217
  %v2320 = vmul.f32 %v540, %v2217
  %v2321 = vmul.f32 %v382, %v2222
  %v2322 = vmul.f32 %v543, %v2222
  %v2323 = vmul.f32 %v385, %v2227
  %v2324 = vmul.f32 %v546, %v2227
  %2326 = vset.pattern.permute.xlu0 0
  %2327 = vperm.xlu0 %2326, %v1941
  %v2328 = vpop.permute.xlu0 %2327
  %2331 = vset.pattern.permute.xlu0 0
  %2332 = vperm.xlu0 %2331, %v1942
  %v2333 = vpop.permute.xlu0 %2332
  %2336 = vset.pattern.permute.xlu0 0
  %2337 = vperm.xlu0 %2336, %v1943
  %v2338 = vpop.permute.xlu0 %2337
  %2341 = vset.pattern.permute.xlu0 0
  %2342 = vperm.xlu0 %2341, %v1944
  %v2343 = vpop.permute.xlu0 %2342
  %2346 = vset.pattern.permute.xlu0 0
  %2347 = vperm.xlu0 %2346, %v1945
  %v2348 = vpop.permute.xlu0 %2347
  %2351 = vset.pattern.permute.xlu0 0
  %2352 = vperm.xlu0 %2351, %v1946
  %v2353 = vpop.permute.xlu0 %2352
  %2356 = vset.pattern.permute.xlu0 0
  %2357 = vperm.xlu0 %2356, %v1947
  %v2358 = vpop.permute.xlu0 %2357
  %2361 = vset.pattern.permute.xlu0 0
  %2362 = vperm.xlu0 %2361, %v1948
  %v2363 = vpop.permute.xlu0 %2362
  %2366 = vset.pattern.permute.xlu0 0
  %2367 = vperm.xlu0 %2366, %v1949
  %v2368 = vpop.permute.xlu0 %2367
  %2371 = vset.pattern.permute.xlu0 0
  %2372 = vperm.xlu0 %2371, %v1950
  %v2373 = vpop.permute.xlu0 %2372
  %2376 = vset.pattern.permute.xlu0 0
  %2377 = vperm.xlu0 %2376, %v1951
  %v2378 = vpop.permute.xlu0 %2377
  %2381 = vset.pattern.permute.xlu0 0
  %2382 = vperm.xlu0 %2381, %v1952
  %v2383 = vpop.permute.xlu0 %2382
  %2386 = vset.pattern.permute.xlu0 0
  %2387 = vperm.xlu0 %2386, %v1953
  %v2388 = vpop.permute.xlu0 %2387
  %2391 = vset.pattern.permute.xlu0 0
  %2392 = vperm.xlu0 %2391, %v1954
  %v2393 = vpop.permute.xlu0 %2392
  %2396 = vset.pattern.permute.xlu0 0
  %2397 = vperm.xlu0 %2396, %v1955
  %v2398 = vpop.permute.xlu0 %2397
  %2401 = vset.pattern.permute.xlu0 0
  %2402 = vperm.xlu0 %2401, %v1956
  %v2403 = vpop.permute.xlu0 %2402
  %2406 = vset.pattern.permute.xlu0 0
  %2407 = vperm.xlu0 %2406, %v1957
  %v2408 = vpop.permute.xlu0 %2407
  %2411 = vset.pattern.permute.xlu0 0
  %2412 = vperm.xlu0 %2411, %v1958
  %v2413 = vpop.permute.xlu0 %2412
  %2416 = vset.pattern.permute.xlu0 0
  %2417 = vperm.xlu0 %2416, %v1959
  %v2418 = vpop.permute.xlu0 %2417
  %2421 = vset.pattern.permute.xlu0 0
  %2422 = vperm.xlu0 %2421, %v1960
  %v2423 = vpop.permute.xlu0 %2422
  %2426 = vset.pattern.permute.xlu0 0
  %2427 = vperm.xlu0 %2426, %v1961
  %v2428 = vpop.permute.xlu0 %2427
  %2431 = vset.pattern.permute.xlu0 0
  %2432 = vperm.xlu0 %2431, %v1962
  %v2433 = vpop.permute.xlu0 %2432
  %2436 = vset.pattern.permute.xlu0 0
  %2437 = vperm.xlu0 %2436, %v1963
  %v2438 = vpop.permute.xlu0 %2437
  %2441 = vset.pattern.permute.xlu0 0
  %2442 = vperm.xlu0 %2441, %v1964
  %v2443 = vpop.permute.xlu0 %2442
  %2446 = vset.pattern.permute.xlu0 0
  %2447 = vperm.xlu0 %2446, %v1965
  %v2448 = vpop.permute.xlu0 %2447
  %2451 = vset.pattern.permute.xlu0 0
  %2452 = vperm.xlu0 %2451, %v1966
  %v2453 = vpop.permute.xlu0 %2452
  %2456 = vset.pattern.permute.xlu0 0
  %2457 = vperm.xlu0 %2456, %v1967
  %v2458 = vpop.permute.xlu0 %2457
  %2461 = vset.pattern.permute.xlu0 0
  %2462 = vperm.xlu0 %2461, %v1968
  %v2463 = vpop.permute.xlu0 %2462
  %2466 = vset.pattern.permute.xlu0 0
  %2467 = vperm.xlu0 %2466, %v1969
  %v2468 = vpop.permute.xlu0 %2467
  %2471 = vset.pattern.permute.xlu0 0
  %2472 = vperm.xlu0 %2471, %v1970
  %v2473 = vpop.permute.xlu0 %2472
  %2476 = vset.pattern.permute.xlu0 0
  %2477 = vperm.xlu0 %2476, %v1971
  %v2478 = vpop.permute.xlu0 %2477
  %2481 = vset.pattern.permute.xlu0 0
  %2482 = vperm.xlu0 %2481, %v1972
  %v2483 = vpop.permute.xlu0 %2482
  %2486 = vset.pattern.permute.xlu0 0
  %2487 = vperm.xlu0 %2486, %v1973
  %v2488 = vpop.permute.xlu0 %2487
  %2491 = vset.pattern.permute.xlu0 0
  %2492 = vperm.xlu0 %2491, %v1974
  %v2493 = vpop.permute.xlu0 %2492
  %2496 = vset.pattern.permute.xlu0 0
  %2497 = vperm.xlu0 %2496, %v1975
  %v2498 = vpop.permute.xlu0 %2497
  %2501 = vset.pattern.permute.xlu0 0
  %2502 = vperm.xlu0 %2501, %v1976
  %v2503 = vpop.permute.xlu0 %2502
  %2506 = vset.pattern.permute.xlu0 0
  %2507 = vperm.xlu0 %2506, %v1977
  %v2508 = vpop.permute.xlu0 %2507
  %2511 = vset.pattern.permute.xlu0 0
  %2512 = vperm.xlu0 %2511, %v1978
  %v2513 = vpop.permute.xlu0 %2512
  %2516 = vset.pattern.permute.xlu0 0
  %2517 = vperm.xlu0 %2516, %v1979
  %v2518 = vpop.permute.xlu0 %2517
  %2521 = vset.pattern.permute.xlu0 0
  %2522 = vperm.xlu0 %2521, %v1980
  %v2523 = vpop.permute.xlu0 %2522
  %2526 = vset.pattern.permute.xlu0 0
  %2527 = vperm.xlu0 %2526, %v1981
  %v2528 = vpop.permute.xlu0 %2527
  %2531 = vset.pattern.permute.xlu0 0
  %2532 = vperm.xlu0 %2531, %v1982
  %v2533 = vpop.permute.xlu0 %2532
  %2536 = vset.pattern.permute.xlu0 0
  %2537 = vperm.xlu0 %2536, %v1983
  %v2538 = vpop.permute.xlu0 %2537
  %2541 = vset.pattern.permute.xlu0 0
  %2542 = vperm.xlu0 %2541, %v1984
  %v2543 = vpop.permute.xlu0 %2542
  %2546 = vset.pattern.permute.xlu0 0
  %2547 = vperm.xlu0 %2546, %v1985
  %v2548 = vpop.permute.xlu0 %2547
  %2551 = vset.pattern.permute.xlu0 0
  %2552 = vperm.xlu0 %2551, %v1986
  %v2553 = vpop.permute.xlu0 %2552
  %2556 = vset.pattern.permute.xlu0 0
  %2557 = vperm.xlu0 %2556, %v1987
  %v2558 = vpop.permute.xlu0 %2557
  %2561 = vset.pattern.permute.xlu0 0
  %2562 = vperm.xlu0 %2561, %v1988
  %v2563 = vpop.permute.xlu0 %2562
  %v2565 = vadd.f32 %v2229, %v2328
  %v2566 = vadd.f32 %v2230, %v2328
  %v2567 = vadd.f32 %v2231, %v2333
  %v2568 = vadd.f32 %v2232, %v2333
  %v2569 = vadd.f32 %v2233, %v2338
  %v2570 = vadd.f32 %v2234, %v2338
  %v2571 = vadd.f32 %v2235, %v2343
  %v2572 = vadd.f32 %v2236, %v2343
  %v2573 = vadd.f32 %v2237, %v2348
  %v2574 = vadd.f32 %v2238, %v2348
  %v2575 = vadd.f32 %v2239, %v2353
  %v2576 = vadd.f32 %v2240, %v2353
  %v2577 = vadd.f32 %v2241, %v2358
  %v2578 = vadd.f32 %v2242, %v2358
  %v2579 = vadd.f32 %v2243, %v2363
  %v2580 = vadd.f32 %v2244, %v2363
  %v2581 = vadd.f32 %v2245, %v2368
  %v2582 = vadd.f32 %v2246, %v2368
  %v2583 = vadd.f32 %v2247, %v2373
  %v2584 = vadd.f32 %v2248, %v2373
  %v2585 = vadd.f32 %v2249, %v2378
  %v2586 = vadd.f32 %v2250, %v2378
  %v2587 = vadd.f32 %v2251, %v2383
  %v2588 = vadd.f32 %v2252, %v2383
  %v2589 = vadd.f32 %v2253, %v2388
  %v2590 = vadd.f32 %v2254, %v2388
  %v2591 = vadd.f32 %v2255, %v2393
  %v2592 = vadd.f32 %v2256, %v2393
  %v2593 = vadd.f32 %v2257, %v2398
  %v2594 = vadd.f32 %v2258, %v2398
  %v2595 = vadd.f32 %v2259, %v2403
  %v2596 = vadd.f32 %v2260, %v2403
  %v2597 = vadd.f32 %v2261, %v2408
  %v2598 = vadd.f32 %v2262, %v2408
  %v2599 = vadd.f32 %v2263, %v2413
  %v2600 = vadd.f32 %v2264, %v2413
  %v2601 = vadd.f32 %v2265, %v2418
  %v2602 = vadd.f32 %v2266, %v2418
  %v2603 = vadd.f32 %v2267, %v2423
  %v2604 = vadd.f32 %v2268, %v2423
  %v2605 = vadd.f32 %v2269, %v2428
  %v2606 = vadd.f32 %v2270, %v2428
  %v2607 = vadd.f32 %v2271, %v2433
  %v2608 = vadd.f32 %v2272, %v2433
  %v2609 = vadd.f32 %v2273, %v2438
  %v2610 = vadd.f32 %v2274, %v2438
  %v2611 = vadd.f32 %v2275, %v2443
  %v2612 = vadd.f32 %v2276, %v2443
  %v2613 = vadd.f32 %v2277, %v2448
  %v2614 = vadd.f32 %v2278, %v2448
  %v2615 = vadd.f32 %v2279, %v2453
  %v2616 = vadd.f32 %v2280, %v2453
  %v2617 = vadd.f32 %v2281, %v2458
  %v2618 = vadd.f32 %v2282, %v2458
  %v2619 = vadd.f32 %v2283, %v2463
  %v2620 = vadd.f32 %v2284, %v2463
  %v2621 = vadd.f32 %v2285, %v2468
  %v2622 = vadd.f32 %v2286, %v2468
  %v2623 = vadd.f32 %v2287, %v2473
  %v2624 = vadd.f32 %v2288, %v2473
  %v2625 = vadd.f32 %v2289, %v2478
  %v2626 = vadd.f32 %v2290, %v2478
  %v2627 = vadd.f32 %v2291, %v2483
  %v2628 = vadd.f32 %v2292, %v2483
  %v2629 = vadd.f32 %v2293, %v2488
  %v2630 = vadd.f32 %v2294, %v2488
  %v2631 = vadd.f32 %v2295, %v2493
  %v2632 = vadd.f32 %v2296, %v2493
  %v2633 = vadd.f32 %v2297, %v2498
  %v2634 = vadd.f32 %v2298, %v2498
  %v2635 = vadd.f32 %v2299, %v2503
  %v2636 = vadd.f32 %v2300, %v2503
  %v2637 = vadd.f32 %v2301, %v2508
  %v2638 = vadd.f32 %v2302, %v2508
  %v2639 = vadd.f32 %v2303, %v2513
  %v2640 = vadd.f32 %v2304, %v2513
  %v2641 = vadd.f32 %v2305, %v2518
  %v2642 = vadd.f32 %v2306, %v2518
  %v2643 = vadd.f32 %v2307, %v2523
  %v2644 = vadd.f32 %v2308, %v2523
  %v2645 = vadd.f32 %v2309, %v2528
  %v2646 = vadd.f32 %v2310, %v2528
  %v2647 = vadd.f32 %v2311, %v2533
  %v2648 = vadd.f32 %v2312, %v2533
  %v2649 = vadd.f32 %v2313, %v2538
  %v2650 = vadd.f32 %v2314, %v2538
  %v2651 = vadd.f32 %v2315, %v2543
  %v2652 = vadd.f32 %v2316, %v2543
  %v2653 = vadd.f32 %v2317, %v2548
  %v2654 = vadd.f32 %v2318, %v2548
  %v2655 = vadd.f32 %v2319, %v2553
  %v2656 = vadd.f32 %v2320, %v2553
  %v2657 = vadd.f32 %v2321, %v2558
  %v2658 = vadd.f32 %v2322, %v2558
  %v2659 = vadd.f32 %v2323, %v2563
  %v2660 = vadd.f32 %v2324, %v2563
  %2661 = vst [vmem:[%s4] sm:$0xff] %v2565
  %2662 = vst.msk [vmem:[%s4 + $0x8] sm:$0xff] %vm548, %v2566
  %2663 = vst [vmem:[%s4 + $0x10] sm:$0xff] %v2567
  %2664 = vst.msk [vmem:[%s4 + $0x18] sm:$0xff] %vm548, %v2568
  %2665 = vst [vmem:[%s4 + $0x20] sm:$0xff] %v2569
  %2666 = vst.msk [vmem:[%s4 + $0x28] sm:$0xff] %vm548, %v2570
  %2667 = vst [vmem:[%s4 + $0x30] sm:$0xff] %v2571
  %2668 = vst.msk [vmem:[%s4 + $0x38] sm:$0xff] %vm548, %v2572
  %2669 = vst [vmem:[%s4 + $0x40] sm:$0xff] %v2573
  %2670 = vst.msk [vmem:[%s4 + $0x48] sm:$0xff] %vm548, %v2574
  %2671 = vst [vmem:[%s4 + $0x50] sm:$0xff] %v2575
  %2672 = vst.msk [vmem:[%s4 + $0x58] sm:$0xff] %vm548, %v2576
  %2673 = vst [vmem:[%s4 + $0x60] sm:$0xff] %v2577
  %2674 = vst.msk [vmem:[%s4 + $0x68] sm:$0xff] %vm548, %v2578
  %2675 = vst [vmem:[%s4 + $0x70] sm:$0xff] %v2579
  %2676 = vst.msk [vmem:[%s4 + $0x78] sm:$0xff] %vm548, %v2580
  %2677 = vst [vmem:[%s4 + $0x80] sm:$0xff] %v2581
  %2678 = vst.msk [vmem:[%s4 + $0x88] sm:$0xff] %vm548, %v2582
  %2679 = vst [vmem:[%s4 + $0x90] sm:$0xff] %v2583
  %2680 = vst.msk [vmem:[%s4 + $0x98] sm:$0xff] %vm548, %v2584
  %2681 = vst [vmem:[%s4 + $0xa0] sm:$0xff] %v2585
  %2682 = vst.msk [vmem:[%s4 + $0xa8] sm:$0xff] %vm548, %v2586
  %2683 = vst [vmem:[%s4 + $0xb0] sm:$0xff] %v2587
  %2684 = vst.msk [vmem:[%s4 + $0xb8] sm:$0xff] %vm548, %v2588
  %2685 = vst [vmem:[%s4 + $0xc0] sm:$0xff] %v2589
  %2686 = vst.msk [vmem:[%s4 + $0xc8] sm:$0xff] %vm548, %v2590
  %2687 = vst [vmem:[%s4 + $0xd0] sm:$0xff] %v2591
  %2688 = vst.msk [vmem:[%s4 + $0xd8] sm:$0xff] %vm548, %v2592
  %2689 = vst [vmem:[%s4 + $0xe0] sm:$0xff] %v2593
  %2690 = vst.msk [vmem:[%s4 + $0xe8] sm:$0xff] %vm548, %v2594
  %2691 = vst [vmem:[%s4 + $0xf0] sm:$0xff] %v2595
  %2692 = vst.msk [vmem:[%s4 + $0xf8] sm:$0xff] %vm548, %v2596
  %2693 = vst [vmem:[%s4 + $0x100] sm:$0xff] %v2597
  %2694 = vst.msk [vmem:[%s4 + $0x108] sm:$0xff] %vm548, %v2598
  %2695 = vst [vmem:[%s4 + $0x110] sm:$0xff] %v2599
  %2696 = vst.msk [vmem:[%s4 + $0x118] sm:$0xff] %vm548, %v2600
  %2697 = vst [vmem:[%s4 + $0x120] sm:$0xff] %v2601
  %2698 = vst.msk [vmem:[%s4 + $0x128] sm:$0xff] %vm548, %v2602
  %2699 = vst [vmem:[%s4 + $0x130] sm:$0xff] %v2603
  %2700 = vst.msk [vmem:[%s4 + $0x138] sm:$0xff] %vm548, %v2604
  %2701 = vst [vmem:[%s4 + $0x140] sm:$0xff] %v2605
  %2702 = vst.msk [vmem:[%s4 + $0x148] sm:$0xff] %vm548, %v2606
  %2703 = vst [vmem:[%s4 + $0x150] sm:$0xff] %v2607
  %2704 = vst.msk [vmem:[%s4 + $0x158] sm:$0xff] %vm548, %v2608
  %2705 = vst [vmem:[%s4 + $0x160] sm:$0xff] %v2609
  %2706 = vst.msk [vmem:[%s4 + $0x168] sm:$0xff] %vm548, %v2610
  %2707 = vst [vmem:[%s4 + $0x170] sm:$0xff] %v2611
  %2708 = vst.msk [vmem:[%s4 + $0x178] sm:$0xff] %vm548, %v2612
  %2709 = vst [vmem:[%s4 + $0x180] sm:$0xff] %v2613
  %2710 = vst.msk [vmem:[%s4 + $0x188] sm:$0xff] %vm548, %v2614
  %2711 = vst [vmem:[%s4 + $0x190] sm:$0xff] %v2615
  %2712 = vst.msk [vmem:[%s4 + $0x198] sm:$0xff] %vm548, %v2616
  %2713 = vst [vmem:[%s4 + $0x1a0] sm:$0xff] %v2617
  %2714 = vst.msk [vmem:[%s4 + $0x1a8] sm:$0xff] %vm548, %v2618
  %2715 = vst [vmem:[%s4 + $0x1b0] sm:$0xff] %v2619
  %2716 = vst.msk [vmem:[%s4 + $0x1b8] sm:$0xff] %vm548, %v2620
  %2717 = vst [vmem:[%s4 + $0x1c0] sm:$0xff] %v2621
  %2718 = vst.msk [vmem:[%s4 + $0x1c8] sm:$0xff] %vm548, %v2622
  %2719 = vst [vmem:[%s4 + $0x1d0] sm:$0xff] %v2623
  %2720 = vst.msk [vmem:[%s4 + $0x1d8] sm:$0xff] %vm548, %v2624
  %2721 = vst [vmem:[%s4 + $0x1e0] sm:$0xff] %v2625
  %2722 = vst.msk [vmem:[%s4 + $0x1e8] sm:$0xff] %vm548, %v2626
  %2723 = vst [vmem:[%s4 + $0x1f0] sm:$0xff] %v2627
  %2724 = vst.msk [vmem:[%s4 + $0x1f8] sm:$0xff] %vm548, %v2628
  %2725 = vst [vmem:[%s4 + $0x200] sm:$0xff] %v2629
  %2726 = vst.msk [vmem:[%s4 + $0x208] sm:$0xff] %vm548, %v2630
  %2727 = vst [vmem:[%s4 + $0x210] sm:$0xff] %v2631
  %2728 = vst.msk [vmem:[%s4 + $0x218] sm:$0xff] %vm548, %v2632
  %2729 = vst [vmem:[%s4 + $0x220] sm:$0xff] %v2633
  %2730 = vst.msk [vmem:[%s4 + $0x228] sm:$0xff] %vm548, %v2634
  %2731 = vst [vmem:[%s4 + $0x230] sm:$0xff] %v2635
  %2732 = vst.msk [vmem:[%s4 + $0x238] sm:$0xff] %vm548, %v2636
  %2733 = vst [vmem:[%s4 + $0x240] sm:$0xff] %v2637
  %2734 = vst.msk [vmem:[%s4 + $0x248] sm:$0xff] %vm548, %v2638
  %2735 = vst [vmem:[%s4 + $0x250] sm:$0xff] %v2639
  %2736 = vst.msk [vmem:[%s4 + $0x258] sm:$0xff] %vm548, %v2640
  %2737 = vst [vmem:[%s4 + $0x260] sm:$0xff] %v2641
  %2738 = vst.msk [vmem:[%s4 + $0x268] sm:$0xff] %vm548, %v2642
  %2739 = vst [vmem:[%s4 + $0x270] sm:$0xff] %v2643
  %2740 = vst.msk [vmem:[%s4 + $0x278] sm:$0xff] %vm548, %v2644
  %2741 = vst [vmem:[%s4 + $0x280] sm:$0xff] %v2645
  %2742 = vst.msk [vmem:[%s4 + $0x288] sm:$0xff] %vm548, %v2646
  %2743 = vst [vmem:[%s4 + $0x290] sm:$0xff] %v2647
  %2744 = vst.msk [vmem:[%s4 + $0x298] sm:$0xff] %vm548, %v2648
  %2745 = vst [vmem:[%s4 + $0x2a0] sm:$0xff] %v2649
  %2746 = vst.msk [vmem:[%s4 + $0x2a8] sm:$0xff] %vm548, %v2650
  %2747 = vst [vmem:[%s4 + $0x2b0] sm:$0xff] %v2651
  %2748 = vst.msk [vmem:[%s4 + $0x2b8] sm:$0xff] %vm548, %v2652
  %2749 = vst [vmem:[%s4 + $0x2c0] sm:$0xff] %v2653
  %2750 = vst.msk [vmem:[%s4 + $0x2c8] sm:$0xff] %vm548, %v2654
  %2751 = vst [vmem:[%s4 + $0x2d0] sm:$0xff] %v2655
  %2752 = vst.msk [vmem:[%s4 + $0x2d8] sm:$0xff] %vm548, %v2656
  %2753 = vst [vmem:[%s4 + $0x2e0] sm:$0xff] %v2657
  %2754 = vst.msk [vmem:[%s4 + $0x2e8] sm:$0xff] %vm548, %v2658
  %2755 = vst [vmem:[%s4 + $0x2f0] sm:$0xff] %v2659
  %2756 = vst.msk [vmem:[%s4 + $0x2f8] sm:$0xff] %vm548, %v2660
  // Predicated region
  $region18: #{tpu_custom_call.1} parent=0 // pred_check
    _
  $region19: #{tpu_custom_call.1} parent=0 // pred_check_branch
    %2758 = sbr.rel (0) target = $region21
  $region20: #{tpu_custom_call.1} parent=0 // pred_region
    _
  $region21: #{tpu_custom_call.1} parent=0 // pred_fallthru
    _
  // Predicated region
  $region22: #{tpu_custom_call.1} parent=0 // pred_check
    _
  $region23: #{tpu_custom_call.1} parent=0 // pred_check_branch
    %2760 = sbr.rel (0) target = $region25
  $region24: #{tpu_custom_call.1} parent=0 // pred_region
    _
  $region25: #{tpu_custom_call.1} parent=0 // pred_fallthru
    _

</llo_original>
